<compile_context>
chip_gen: v7x
topology: tpu7x:2x2x1
jax: 0.10.0
libtpu: 0.0.40
codegen_flags: <defaults>
</compile_context>

<pallas_src>
import functools

import jax
import jax.numpy as jnp
from jax.experimental import pallas as pl
from jax.experimental.pallas import tpu as pltpu

BN_EPS = 1e-5

# Scoped-VMEM limit requested from Mosaic: 48 MiB leaves headroom under v7x's
# 64 MiB physical VMEM and is comfortably below v5e/v6e's 128 MiB.
VMEM_LIMIT_BYTES = 48 << 20


def _choose_row_tile(H, W, Cin, Cout, in_itemsize, y_itemsize,
                     budget_bytes=20 << 20):
    """Largest row tile TH such that
         * TH divides H,
         * the flattened tile (TH*(W+2)) is a multiple of 128 (legal + lane-dense
           pass-1 output block),
         * an estimate of ALL resident pass-1 VMEM buffers fits `budget_bytes`.
       Falls back to the whole image (TH == H; block == full array is always legal)."""
    Wp = W + 2

    def footprint(th):
        l_in = (th + 2) * Wp + 2
        l_out = th * Wp
        return (2 * Cin * l_in * in_itemsize          # haloed input tile, double-buffered
                + 2 * Cout * l_out * y_itemsize       # conv-out tile, double-buffered
                + 2 * 9 * Cin * l_out * in_itemsize   # tap slabs + concatenated patches
                + 3 * Cout * l_out * 4)               # f32 acc + masked/centered temps

    cands = [d for d in range(1, H)
             if H % d == 0 and (d * Wp) % 128 == 0
             and footprint(d) <= budget_bytes]
    return max(cands) if cands else H


def _choose_bn_tile(H, Wp, Cout, y_itemsize, budget_bytes=24 << 20):
    """Row tile for the streaming BN+tanh pass, decoupled from the conv tile: as
       large as the VMEM budget allows.  Multiples of 16 keep the bf16 input block
       sublane-aligned; TH2 == H is always legal."""
    def footprint(th):
        return 2 * Cout * th * Wp * (y_itemsize + 4 + 4)

    if footprint(H) <= budget_bytes:
        return H
    cands = [d for d in range(16, H, 16)
             if H % d == 0 and footprint(d) <= budget_bytes]
    return max(cands) if cands else H


def _conv_stats_kernel(x_ref, w_ref, b_ref, mask_ref, y_ref, stats_ref, *,
                       wp, w_valid):
    """Pass 1: 3x3 conv as ONE (Cout, 9*Cin) @ (9*Cin, TH*Wp) matmul + bias, plus
    per-tile BN partials merged (Chan) into a per-sample resident stats block.

    x_ref    : (1, 1, Cin, (TH+2)*Wp + 2)  flattened haloed window (f32 or bf16)
    w_ref    : (Cout, 9*Cin)               weight, columns ordered (kh, kw, ci)
    b_ref    : (Cout, 1)                   conv bias (f32)
    mask_ref : (1, TH*Wp)                  1.0 on valid columns, 0.0 on pad columns
    y_ref    : (1, Cout, TH*Wp)            conv output tile, padded-row layout
    stats_ref: (1, 2, Cout)                per-sample running [sum, M2] (resident)
    """
    l_out = y_ref.shape[2]
    th = l_out // wp
    tile_cnt = float(th * w_valid)

    xs = x_ref[0, 0]                                     # (Cin, (TH+2)*Wp + 2)

    # im2col^T: the 9 taps are static lane-shifted views of the flattened padded
    # rows, stacked along sublanes (channels) -> (9*Cin, TH*Wp).  Working in padded
    # row coordinates keeps every slab a plain slice; the 2 pad columns per row are
    # masked out of the stats below and dropped at the pass-2 store.
    slabs = []
    for kh in range(3):
        for kw in range(3):
            o = kh * wp + kw
            slabs.append(xs[:, o:o + l_out])
    patches_t = jnp.concatenate(slabs, axis=0)           # (9*Cin, TH*Wp)

    acc = jnp.dot(w_ref[...], patches_t,
                  preferred_element_type=jnp.float32)    # (Cout, TH*Wp) f32
    acc = acc + b_ref[...]                               # conv bias

    # Per-tile BN partials over valid columns: sum and mean-centered sum of squares.
    mask = mask_ref[...]                                 # (1, TH*Wp)
    masked = acc * mask
    tile_sum = jnp.sum(masked, axis=1)                   # (Cout,)
    tile_mean = tile_sum * (1.0 / tile_cnt)
    cent = (acc - tile_mean[:, None]) * mask
    tile_m2 = jnp.sum(cent * cent, axis=1)               # (Cout,)

    t = pl.program_id(1)

    @pl.when(t == 0)
    def _():
        stats_ref[0, 0, :] = tile_sum
        stats_ref[0, 1, :] = tile_m2

    @pl.when(t > 0)
    def _():
        # Chan's parallel-variance merge of this tile into the per-sample running
        # (sum, M2) held in the resident output block (one HBM store per sample).
        n2 = tile_cnt
        n1 = n2 * t.astype(jnp.float32)
        run_sum = stats_ref[0, 0, :]
        run_m2 = stats_ref[0, 1, :]
        delta = tile_sum * (1.0 / n2) - run_sum / n1
        stats_ref[0, 0, :] = run_sum + tile_sum
        stats_ref[0, 1, :] = run_m2 + tile_m2 + delta * delta * (n1 * n2 / (n1 + n2))

    # Lane-dense store, channels already on sublanes (no transpose); bf16 by default
    # to halve the inter-pass HBM round trip.
    y_ref[0] = acc.astype(y_ref.dtype)


def _bn_tanh_kernel(y_ref, scale_ref, shift_ref, o_ref):
    """Pass 2: fused BN affine + tanh.  Reads the padded-row-layout conv output and
    writes dense NCHW by dropping the 2 pad lanes per row at the store."""
    w_out = o_ref.shape[3]
    y = y_ref[0].astype(jnp.float32)                     # (Cout, TH2, Wp)
    z = jnp.tanh(y * scale_ref[...] + shift_ref[...])
    o_ref[0] = z[:, :, :w_out].astype(o_ref.dtype)


@functools.partial(jax.jit,
                   static_argnames=("compute_dtype", "y_dtype", "row_tile"))
def conv_block_tanh(x_nchw, weight, bias, gamma, beta,
                    compute_dtype=jnp.float32, y_dtype=jnp.bfloat16,
                    row_tile=None):
    """x_nchw: (N, Cin, H, W); weight: (Cout, Cin, 3, 3) (PyTorch layouts). Returns NCHW f32.

    compute_dtype: dtype the input/weight are streamed in (bf16 recommended on v5e);
    y_dtype: dtype of the conv-output intermediate (bf16 default -> half the HBM
    round trip between the two passes; BN stats / affine / tanh stay f32)."""
    N, Cin, H, W = x_nchw.shape
    Cout = weight.shape[0]
    Wp = W + 2
    in_size = jnp.dtype(compute_dtype).itemsize
    y_size = jnp.dtype(y_dtype).itemsize

    TH = row_tile if row_tile is not None else _choose_row_tile(
        H, W, Cin, Cout, in_size, y_size)
    assert H % TH == 0, (H, TH)
    T = H // TH
    assert T == 1 or (TH * Wp) % 128 == 0, (TH, Wp)
    l_out = TH * Wp
    # +2: the (kh=2, kw=2) tap under the last row's pad columns reads 2 elements past
    # the halo; those values only feed discarded columns, so zero padding is fine.
    l_in = (TH + 2) * Wp + 2

    # Consume x directly as NCHW (no NHWC transpose).  One fused XLA pass builds the
    # per-tile haloed windows, flattened per row-tile so the kernel never reshapes
    # across lanes.  Halo duplication costs 2/TH extra bytes of x.
    x_pad = jnp.pad(x_nchw, ((0, 0), (0, 0), (1, 1), (1, 1))).astype(compute_dtype)
    x_flat = jnp.pad(x_pad.reshape(N, Cin, (H + 2) * Wp), ((0, 0), (0, 0), (0, 2)))
    if T == 1:
        x_tiles = x_flat[:, None]                                     # (N, 1, Cin, l_in)
    else:
        idx = (jnp.arange(T) * (TH * Wp))[:, None] + jnp.arange(l_in)[None, :]
        x_tiles = jnp.transpose(x_flat[:, :, idx], (0, 2, 1, 3))      # (N, T, Cin, l_in)

    # Weight as (Cout, 9*Cin), columns ordered (kh, kw, ci) to match the patch rows.
    w_t = jnp.transpose(weight, (0, 2, 3, 1)).reshape(Cout, 9 * Cin).astype(compute_dtype)
    bias2d = bias.reshape(Cout, 1).astype(jnp.float32)
    # Valid-column mask over the flattened padded rows (zeros on the 2 pad columns).
    col_mask = jnp.tile(jnp.arange(Wp) < W, TH).astype(jnp.float32).reshape(1, l_out)

    kernel1 = functools.partial(_conv_stats_kernel, wp=Wp, w_valid=W)
    bytes1 = (x_tiles.size * in_size + N * Cout * H * Wp * y_size
              + N * 2 * Cout * 4 + w_t.size * in_size)

    y, stats = pl.pallas_call(
        kernel1,
        out_shape=(
            jax.ShapeDtypeStruct((N, Cout, H * Wp), y_dtype),    # conv out, padded-row flat
            jax.ShapeDtypeStruct((N, 2, Cout), jnp.float32),     # per-sample [sum, M2]
        ),
        grid_spec=pltpu.PrefetchScalarGridSpec(
            num_scalar_prefetch=0,
            grid=(N, T),
            in_specs=[
                pl.BlockSpec((1, 1, Cin, l_in), lambda n, t: (n, t, 0, 0)),
                pl.BlockSpec((Cout, 9 * Cin), lambda n, t: (0, 0)),
                pl.BlockSpec((Cout, 1), lambda n, t: (0, 0)),
                pl.BlockSpec((1, l_out), lambda n, t: (0, 0)),
            ],
            out_specs=[
                pl.BlockSpec((1, Cout, l_out), lambda n, t: (n, 0, t)),
                pl.BlockSpec((1, 2, Cout), lambda n, t: (n, 0, 0)),
            ],
        ),
        compiler_params=pltpu.CompilerParams(
            # t must stay sequential per sample: the stats block is a resident
            # accumulator across the row-tile axis; n shards across cores.
            dimension_semantics=("parallel", "arbitrary"),
            vmem_limit_bytes=VMEM_LIMIT_BYTES),
        cost_estimate=pl.CostEstimate(
            flops=int(2 * N * H * W * 9 * Cin * Cout),
            transcendentals=0,
            bytes_accessed=int(bytes1)),
    )(x_tiles, w_t, bias2d, col_mask)

    # Finalize BN batch statistics (tiny per-channel math, f32): Chan merge across
    # samples, then fold BN into one per-channel scale/shift for pass 2.
    cnt_s = float(H * W)
    s_sum = stats[:, 0, :]
    s_m2 = stats[:, 1, :]
    s_mean = s_sum / cnt_s
    mean = jnp.mean(s_mean, axis=0)                                     # (Cout,)
    m2 = jnp.sum(s_m2, axis=0) + cnt_s * jnp.sum((s_mean - mean) ** 2, axis=0)
    var = m2 / float(N * H * W)                                         # biased (training BN)
    inv_std = jax.lax.rsqrt(var + BN_EPS)
    g = gamma.astype(jnp.float32)
    scale = (g * inv_std).reshape(Cout, 1, 1)
    shift = (beta.astype(jnp.float32) - mean * g * inv_std).reshape(Cout, 1, 1)

    # Pass 2: streaming BN affine + tanh, tiled independently of pass 1.
    TH2 = _choose_bn_tile(H, Wp, Cout, y_size)
    T2 = H // TH2
    y4 = y.reshape(N, Cout, H, Wp)                     # metadata-only reshape
    bytes2 = N * Cout * H * (Wp * y_size + W * 4) + 2 * Cout * 4

    out = pl.pallas_call(
        _bn_tanh_kernel,
        out_shape=jax.ShapeDtypeStruct((N, Cout, H, W), jnp.float32),
        grid_spec=pltpu.PrefetchScalarGridSpec(
            num_scalar_prefetch=0,
            grid=(N, T2),
            in_specs=[
                pl.BlockSpec((1, Cout, TH2, Wp), lambda n, t: (n, 0, t, 0)),
                pl.BlockSpec((Cout, 1, 1), lambda n, t: (0, 0, 0)),
                pl.BlockSpec((Cout, 1, 1), lambda n, t: (0, 0, 0)),
            ],
            out_specs=pl.BlockSpec((1, Cout, TH2, W), lambda n, t: (n, 0, t, 0)),
        ),
        compiler_params=pltpu.CompilerParams(
            dimension_semantics=("parallel", "parallel"),
            vmem_limit_bytes=VMEM_LIMIT_BYTES),
        cost_estimate=pl.CostEstimate(
            flops=int(2 * N * Cout * H * Wp),
            transcendentals=int(N * Cout * H * Wp),
            bytes_accessed=int(bytes2)),
    )(y4, scale, shift)

    return out


def _reference(x_nchw, weight, bias, gamma, beta):
    """Pure-JAX reference (lax.conv + BN(batch stats) + tanh), f32."""
    y = jax.lax.conv_general_dilated(
        x_nchw.astype(jnp.float32), weight.astype(jnp.float32),
        window_strides=(1, 1), padding=((1, 1), (1, 1)),
        dimension_numbers=("NCHW", "OIHW", "NCHW"))
    y = y + bias.reshape(1, -1, 1, 1)
    mean = jnp.mean(y, axis=(0, 2, 3), keepdims=True)
    var = jnp.mean((y - mean) ** 2, axis=(0, 2, 3), keepdims=True)
    y = (y - mean) * jax.lax.rsqrt(var + BN_EPS)
    y = y * gamma.reshape(1, -1, 1, 1) + beta.reshape(1, -1, 1, 1)
    return jnp.tanh(y)


if __name__ == "__main__":
    key = jax.random.PRNGKey(0)
    ks = jax.random.split(key, 6)

    # Config A: small shapes consistent with the module (single-tile path, T == 1).
    N, Cin, H, W, Cout = 2, 4, 16, 16, 8
    x = jax.random.normal(ks[0], (N, Cin, H, W), dtype=jnp.float32)
    weight = 0.1 * jax.random.normal(ks[1], (Cout, Cin, 3, 3), dtype=jnp.float32)
    bias = 0.05 * jax.random.normal(ks[2], (Cout,), dtype=jnp.float32)
    gamma = jnp.ones((Cout,), dtype=jnp.float32)   # BatchNorm2d default weight
    beta = jnp.zeros((Cout,), dtype=jnp.float32)   # BatchNorm2d default bias

    ref = jax.block_until_ready(_reference(x, weight, bias, gamma, beta))

    # Exact-semantics path (f32 streaming, f32 intermediate): tight tolerance.
    out_f32 = jax.block_until_ready(
        conv_block_tanh(x, weight, bias, gamma, beta,
                        compute_dtype=jnp.float32, y_dtype=jnp.float32))
    assert out_f32.shape == (N, Cout, H, W), out_f32.shape
    err_f32 = float(jnp.max(jnp.abs(out_f32 - ref)))
    assert err_f32 < 1e-4, err_f32

    # Bandwidth-optimized path (bf16 input/weight streaming + bf16 intermediate,
    # f32 MXU accumulation and f32 BN/tanh): loose functional check.
    out_bf16 = jax.block_until_ready(
        conv_block_tanh(x, weight, bias, gamma, beta, compute_dtype=jnp.bfloat16))
    err_bf16 = float(jnp.max(jnp.abs(out_bf16 - ref)))
    assert err_bf16 < 5e-2, err_bf16

    # Config B: exercises the halo-tiled path (T > 1 -> streaming Chan merge and the
    # window gather) and odd channel counts, with exact f32 semantics.
    N2, C2, H2, W2, Co2 = 2, 3, 16, 30, 5
    x2 = jax.random.normal(ks[3], (N2, C2, H2, W2), dtype=jnp.float32)
    w2 = 0.1 * jax.random.normal(ks[4], (Co2, C2, 3, 3), dtype=jnp.float32)
    b2 = 0.05 * jax.random.normal(ks[5], (Co2,), dtype=jnp.float32)
    g2 = 1.0 + 0.1 * jnp.arange(Co2, dtype=jnp.float32)
    be2 = 0.01 * jnp.arange(Co2, dtype=jnp.float32)
    ref2 = jax.block_until_ready(_reference(x2, w2, b2, g2, be2))
    out2 = jax.block_until_ready(
        conv_block_tanh(x2, w2, b2, g2, be2,
                        compute_dtype=jnp.float32, y_dtype=jnp.float32))
    assert out2.shape == (N2, Co2, H2, W2), out2.shape
    err2 = float(jnp.max(jnp.abs(out2 - ref2)))
    assert err2 < 1e-4, err2

    print("KERNEL_OK")
</pallas_src>

<mosaic_0001>
module attributes {stable_mosaic.version = 11 : i64} {
  func.func @_bn_tanh_kernel(%arg0: i32, %arg1: i32, %arg2: memref<1x8x16x18xf32, #tpu.memory_space<vmem>>, %arg3: memref<8x1x1xf32, #tpu.memory_space<vmem>>, %arg4: memref<8x1x1xf32, #tpu.memory_space<vmem>>, %arg5: memref<1x8x16x16xf32, #tpu.memory_space<vmem>>) attributes {dimension_semantics = [#tpu.dimension_semantics<parallel>, #tpu.dimension_semantics<parallel>], iteration_bounds = array<i64: 2, 1>, scalar_prefetch = 0 : i64, scratch_operands = 0 : i64, tpu.core_type = #tpu.core_type<tc>, window_params = [{transform_indices = @transform_0, window_bounds = array<i64: 1, 8, 16, 18>}, {pipeline_mode = #tpu.pipeline_mode<synchronous>, transform_indices = @transform_1, window_bounds = array<i64: 8, 1, 1>}, {pipeline_mode = #tpu.pipeline_mode<synchronous>, transform_indices = @transform_2, window_bounds = array<i64: 8, 1, 1>}, {transform_indices = @transform_3, window_bounds = array<i64: 1, 8, 16, 16>}]} {
    %c0 = arith.constant 0 : index
    %c0_0 = arith.constant 0 : index
    %c0_1 = arith.constant 0 : index
    %c0_2 = arith.constant 0 : index
    %0 = vector.load %arg2[%c0, %c0_0, %c0_1, %c0_2] : memref<1x8x16x18xf32, #tpu.memory_space<vmem>>, vector<1x8x16x18xf32>
    %1 = vector.shape_cast %0 : vector<1x8x16x18xf32> to vector<8x16x18xf32>
    %c0_3 = arith.constant 0 : index
    %c0_4 = arith.constant 0 : index
    %c0_5 = arith.constant 0 : index
    %2 = vector.load %arg3[%c0_3, %c0_4, %c0_5] : memref<8x1x1xf32, #tpu.memory_space<vmem>>, vector<8x1x1xf32>
    %3 = vector.broadcast %2 : vector<8x1x1xf32> to vector<8x16x18xf32>
    %4 = arith.mulf %1, %3 : vector<8x16x18xf32>
    %c0_6 = arith.constant 0 : index
    %c0_7 = arith.constant 0 : index
    %c0_8 = arith.constant 0 : index
    %5 = vector.load %arg4[%c0_6, %c0_7, %c0_8] : memref<8x1x1xf32, #tpu.memory_space<vmem>>, vector<8x1x1xf32>
    %6 = vector.broadcast %5 : vector<8x1x1xf32> to vector<8x16x18xf32>
    %7 = arith.addf %4, %6 : vector<8x16x18xf32>
    %8 = math.tanh %7 : vector<8x16x18xf32>
    %9 = vector.extract_strided_slice %8 {offsets = [0, 0, 0], sizes = [8, 16, 16], strides = [1, 1, 1]} : vector<8x16x18xf32> to vector<8x16x16xf32>
    %c0_9 = arith.constant 0 : index
    %c0_10 = arith.constant 0 : index
    %c0_11 = arith.constant 0 : index
    %c0_12 = arith.constant 0 : index
    %10 = vector.load %arg5[%c0_9, %c0_10, %c0_11, %c0_12] : memref<1x8x16x16xf32, #tpu.memory_space<vmem>>, vector<1x8x16x16xf32>
    %11 = vector.shape_cast %10 : vector<1x8x16x16xf32> to vector<8x16x16xf32>
    %12 = vector.shape_cast %9 : vector<8x16x16xf32> to vector<1x8x16x16xf32>
    tpu.vector_store %arg5[%c0_9, %c0_10, %c0_11, %c0_12], %12 {strides = array<i32>} : memref<1x8x16x16xf32, #tpu.memory_space<vmem>>, vector<1x8x16x16xf32>,
    return
  }
  func.func @transform_0(%arg0: i32, %arg1: i32) -> (i32, i32, i32, i32) {
    %c0_i32 = arith.constant 0 : i32
    %c0_i32_0 = arith.constant 0 : i32
    %c0_i32_1 = arith.constant 0 : i32
    return %arg0, %c0_i32, %arg1, %c0_i32_0 : i32, i32, i32, i32
  }
  func.func @transform_1(%arg0: i32, %arg1: i32) -> (i32, i32, i32) {
    %c0_i32 = arith.constant 0 : i32
    %c0_i32_0 = arith.constant 0 : i32
    %c0_i32_1 = arith.constant 0 : i32
    %c0_i32_2 = arith.constant 0 : i32
    return %c0_i32, %c0_i32_0, %c0_i32_1 : i32, i32, i32
  }
  func.func @transform_2(%arg0: i32, %arg1: i32) -> (i32, i32, i32) {
    %c0_i32 = arith.constant 0 : i32
    %c0_i32_0 = arith.constant 0 : i32
    %c0_i32_1 = arith.constant 0 : i32
    %c0_i32_2 = arith.constant 0 : i32
    return %c0_i32, %c0_i32_0, %c0_i32_1 : i32, i32, i32
  }
  func.func @transform_3(%arg0: i32, %arg1: i32) -> (i32, i32, i32, i32) {
    %c0_i32 = arith.constant 0 : i32
    %c0_i32_0 = arith.constant 0 : i32
    %c0_i32_1 = arith.constant 0 : i32
    return %arg0, %c0_i32, %arg1, %c0_i32_0 : i32, i32, i32, i32
  }
}

module attributes {stable_mosaic.version = 11 : i64} {
  func.func @_conv_stats_kernel(%arg0: i32, %arg1: i32, %arg2: memref<1x1x4x326xf32, #tpu.memory_space<vmem>>, %arg3: memref<8x36xf32, #tpu.memory_space<vmem>>, %arg4: memref<8x1xf32, #tpu.memory_space<vmem>>, %arg5: memref<1x288xf32, #tpu.memory_space<vmem>>, %arg6: memref<1x8x288xf32, #tpu.memory_space<vmem>>, %arg7: memref<1x2x8xf32, #tpu.memory_space<vmem>>) attributes {dimension_semantics = [#tpu.dimension_semantics<parallel>, #tpu.dimension_semantics<arbitrary>], iteration_bounds = array<i64: 2, 1>, scalar_prefetch = 0 : i64, scratch_operands = 0 : i64, tpu.core_type = #tpu.core_type<tc>, window_params = [{transform_indices = @transform_0, window_bounds = array<i64: 1, 1, 4, 326>}, {pipeline_mode = #tpu.pipeline_mode<synchronous>, transform_indices = @transform_1, window_bounds = array<i64: 8, 36>}, {pipeline_mode = #tpu.pipeline_mode<synchronous>, transform_indices = @transform_2, window_bounds = array<i64: 8, 1>}, {pipeline_mode = #tpu.pipeline_mode<synchronous>, transform_indices = @transform_3, window_bounds = array<i64: 1, 288>}, {transform_indices = @transform_4, window_bounds = array<i64: 1, 8, 288>}, {transform_indices = @transform_5, window_bounds = array<i64: 1, 2, 8>}]} {
    %c0 = arith.constant 0 : index
    %c0_0 = arith.constant 0 : index
    %c0_1 = arith.constant 0 : index
    %c0_2 = arith.constant 0 : index
    %0 = vector.load %arg2[%c0, %c0_0, %c0_1, %c0_2] : memref<1x1x4x326xf32, #tpu.memory_space<vmem>>, vector<1x1x4x326xf32>
    %1 = vector.shape_cast %0 : vector<1x1x4x326xf32> to vector<4x326xf32>
    %2 = vector.extract_strided_slice %1 {offsets = [0, 0], sizes = [4, 288], strides = [1, 1]} : vector<4x326xf32> to vector<4x288xf32>
    %3 = vector.extract_strided_slice %1 {offsets = [0, 1], sizes = [4, 288], strides = [1, 1]} : vector<4x326xf32> to vector<4x288xf32>
    %4 = vector.extract_strided_slice %1 {offsets = [0, 2], sizes = [4, 288], strides = [1, 1]} : vector<4x326xf32> to vector<4x288xf32>
    %5 = vector.extract_strided_slice %1 {offsets = [0, 18], sizes = [4, 288], strides = [1, 1]} : vector<4x326xf32> to vector<4x288xf32>
    %6 = vector.extract_strided_slice %1 {offsets = [0, 19], sizes = [4, 288], strides = [1, 1]} : vector<4x326xf32> to vector<4x288xf32>
    %7 = vector.extract_strided_slice %1 {offsets = [0, 20], sizes = [4, 288], strides = [1, 1]} : vector<4x326xf32> to vector<4x288xf32>
    %8 = vector.extract_strided_slice %1 {offsets = [0, 36], sizes = [4, 288], strides = [1, 1]} : vector<4x326xf32> to vector<4x288xf32>
    %9 = vector.extract_strided_slice %1 {offsets = [0, 37], sizes = [4, 288], strides = [1, 1]} : vector<4x326xf32> to vector<4x288xf32>
    %10 = vector.extract_strided_slice %1 {offsets = [0, 38], sizes = [4, 288], strides = [1, 1]} : vector<4x326xf32> to vector<4x288xf32>
    %11 = tpu.concatenate %2, %3, %4, %5, %6, %7, %8, %9, %10 in 0 : vector<4x288xf32>, vector<4x288xf32>, vector<4x288xf32>, vector<4x288xf32>, vector<4x288xf32>, vector<4x288xf32>, vector<4x288xf32>, vector<4x288xf32>, vector<4x288xf32> -> vector<36x288xf32>
    %c0_3 = arith.constant 0 : index
    %c0_4 = arith.constant 0 : index
    %12 = vector.load %arg3[%c0_3, %c0_4] : memref<8x36xf32, #tpu.memory_space<vmem>>, vector<8x36xf32>
    %cst = arith.constant dense<0.000000e+00> : vector<8x288xf32>
    %13 = tpu.matmul %12, %11, %cst {dimension_numbers = #tpu.dot_dimension_numbers<[1], [0], [0], [1], [0, 0, 1, 1], [], []>} : vector<8x36xf32>, vector<36x288xf32>, vector<8x288xf32> -> vector<8x288xf32>
    %c0_5 = arith.constant 0 : index
    %c0_6 = arith.constant 0 : index
    %14 = vector.load %arg4[%c0_5, %c0_6] : memref<8x1xf32, #tpu.memory_space<vmem>>, vector<8x1xf32>
    %15 = vector.broadcast %14 : vector<8x1xf32> to vector<8x288xf32>
    %16 = arith.addf %13, %15 : vector<8x288xf32>
    %c0_7 = arith.constant 0 : index
    %c0_8 = arith.constant 0 : index
    %17 = vector.load %arg5[%c0_7, %c0_8] : memref<1x288xf32, #tpu.memory_space<vmem>>, vector<1x288xf32>
    %18 = vector.broadcast %17 : vector<1x288xf32> to vector<8x288xf32>
    %19 = arith.mulf %16, %18 : vector<8x288xf32>
    %cst_9 = arith.constant dense<0.000000e+00> : vector<8xf32>
    %20 = vector.multi_reduction <add>, %19, %cst_9 [1] : vector<8x288xf32> to vector<8xf32>
    %cst_10 = arith.constant 3.906250e-03 : f32
    %21 = vector.broadcast %cst_10 : f32 to vector<8xf32>
    %22 = arith.mulf %20, %21 : vector<8xf32>
    %23 = vector.shape_cast %22 : vector<8xf32> to vector<8x1xf32>
    %24 = vector.broadcast %23 : vector<8x1xf32> to vector<8x288xf32>
    %25 = arith.subf %16, %24 : vector<8x288xf32>
    %26 = vector.broadcast %17 : vector<1x288xf32> to vector<8x288xf32>
    %27 = arith.mulf %25, %26 : vector<8x288xf32>
    %28 = arith.mulf %27, %27 : vector<8x288xf32>
    %cst_11 = arith.constant dense<0.000000e+00> : vector<8xf32>
    %29 = vector.multi_reduction <add>, %28, %cst_11 [1] : vector<8x288xf32> to vector<8xf32>
    %c0_i32 = arith.constant 0 : i32
    %30 = arith.cmpi eq, %arg1, %c0_i32 : i32
    %31 = arith.extui %30 : i1 to i32
    %c0_i32_12 = arith.constant 0 : i32
    %32 = arith.cmpi ne, %31, %c0_i32_12 : i32
    scf.if %32 {
      %c0_18 = arith.constant 0 : index
      %c0_19 = arith.constant 0 : index
      %c0_20 = arith.constant 0 : index
      %39 = vector.load %arg7[%c0_18, %c0_19, %c0_20] : memref<1x2x8xf32, #tpu.memory_space<vmem>>, vector<1x1x8xf32>
      %40 = vector.shape_cast %39 : vector<1x1x8xf32> to vector<8xf32>
      %41 = vector.shape_cast %20 : vector<8xf32> to vector<1x1x8xf32>
      tpu.vector_store %arg7[%c0_18, %c0_19, %c0_20], %41 {strides = array<i32>} : memref<1x2x8xf32, #tpu.memory_space<vmem>>, vector<1x1x8xf32>,
      %c0_21 = arith.constant 0 : index
      %c1 = arith.constant 1 : index
      %c0_22 = arith.constant 0 : index
      %42 = vector.load %arg7[%c0_21, %c1, %c0_22] : memref<1x2x8xf32, #tpu.memory_space<vmem>>, vector<1x1x8xf32>
      %43 = vector.shape_cast %42 : vector<1x1x8xf32> to vector<8xf32>
      %44 = vector.shape_cast %29 : vector<8xf32> to vector<1x1x8xf32>
      tpu.vector_store %arg7[%c0_21, %c1, %c0_22], %44 {strides = array<i32>} : memref<1x2x8xf32, #tpu.memory_space<vmem>>, vector<1x1x8xf32>,
    } else {
    }
    %c0_i32_13 = arith.constant 0 : i32
    %33 = arith.cmpi sgt, %arg1, %c0_i32_13 : i32
    %34 = arith.extui %33 : i1 to i32
    %c0_i32_14 = arith.constant 0 : i32
    %35 = arith.cmpi ne, %34, %c0_i32_14 : i32
    scf.if %35 {
      %39 = arith.sitofp %arg1 : i32 to f32
      %cst_18 = arith.constant 2.560000e+02 : f32
      %40 = arith.mulf %cst_18, %39 : f32
      %c0_19 = arith.constant 0 : index
      %c0_20 = arith.constant 0 : index
      %c0_21 = arith.constant 0 : index
      %41 = vector.load %arg7[%c0_19, %c0_20, %c0_21] : memref<1x2x8xf32, #tpu.memory_space<vmem>>, vector<1x1x8xf32>
      %42 = vector.shape_cast %41 : vector<1x1x8xf32> to vector<8xf32>
      %c0_22 = arith.constant 0 : index
      %c1 = arith.constant 1 : index
      %c0_23 = arith.constant 0 : index
      %43 = vector.load %arg7[%c0_22, %c1, %c0_23] : memref<1x2x8xf32, #tpu.memory_space<vmem>>, vector<1x1x8xf32>
      %44 = vector.shape_cast %43 : vector<1x1x8xf32> to vector<8xf32>
      %cst_24 = arith.constant 3.906250e-03 : f32
      %45 = vector.broadcast %cst_24 : f32 to vector<8xf32>
      %46 = arith.mulf %20, %45 : vector<8xf32>
      %47 = vector.broadcast %40 : f32 to vector<8xf32>
      %48 = arith.divf %42, %47 : vector<8xf32>
      %49 = arith.subf %46, %48 : vector<8xf32>
      %50 = arith.addf %42, %20 : vector<8xf32>
      %c0_25 = arith.constant 0 : index
      %c0_26 = arith.constant 0 : index
      %c0_27 = arith.constant 0 : index
      %51 = vector.load %arg7[%c0_25, %c0_26, %c0_27] : memref<1x2x8xf32, #tpu.memory_space<vmem>>, vector<1x1x8xf32>
      %52 = vector.shape_cast %51 : vector<1x1x8xf32> to vector<8xf32>
      %53 = vector.shape_cast %50 : vector<8xf32> to vector<1x1x8xf32>
      tpu.vector_store %arg7[%c0_25, %c0_26, %c0_27], %53 {strides = array<i32>} : memref<1x2x8xf32, #tpu.memory_space<vmem>>, vector<1x1x8xf32>,
      %54 = arith.addf %44, %29 : vector<8xf32>
      %55 = arith.mulf %49, %49 : vector<8xf32>
      %cst_28 = arith.constant 2.560000e+02 : f32
      %56 = arith.mulf %40, %cst_28 : f32
      %cst_29 = arith.constant 2.560000e+02 : f32
      %57 = arith.addf %40, %cst_29 : f32
      %58 = arith.divf %56, %57 : f32
      %59 = vector.broadcast %58 : f32 to vector<8xf32>
      %60 = arith.mulf %55, %59 : vector<8xf32>
      %61 = arith.addf %54, %60 : vector<8xf32>
      %c0_30 = arith.constant 0 : index
      %c1_31 = arith.constant 1 : index
      %c0_32 = arith.constant 0 : index
      %62 = vector.load %arg7[%c0_30, %c1_31, %c0_32] : memref<1x2x8xf32, #tpu.memory_space<vmem>>, vector<1x1x8xf32>
      %63 = vector.shape_cast %62 : vector<1x1x8xf32> to vector<8xf32>
      %64 = vector.shape_cast %61 : vector<8xf32> to vector<1x1x8xf32>
      tpu.vector_store %arg7[%c0_30, %c1_31, %c0_32], %64 {strides = array<i32>} : memref<1x2x8xf32, #tpu.memory_space<vmem>>, vector<1x1x8xf32>,
    } else {
    }
    %c0_15 = arith.constant 0 : index
    %c0_16 = arith.constant 0 : index
    %c0_17 = arith.constant 0 : index
    %36 = vector.load %arg6[%c0_15, %c0_16, %c0_17] : memref<1x8x288xf32, #tpu.memory_space<vmem>>, vector<1x8x288xf32>
    %37 = vector.shape_cast %36 : vector<1x8x288xf32> to vector<8x288xf32>
    %38 = vector.shape_cast %16 : vector<8x288xf32> to vector<1x8x288xf32>
    tpu.vector_store %arg6[%c0_15, %c0_16, %c0_17], %38 {strides = array<i32>} : memref<1x8x288xf32, #tpu.memory_space<vmem>>, vector<1x8x288xf32>,
    return
  }
  func.func @transform_0(%arg0: i32, %arg1: i32) -> (i32, i32, i32, i32) {
    %c0_i32 = arith.constant 0 : i32
    %c0_i32_0 = arith.constant 0 : i32
    %c0_i32_1 = arith.constant 0 : i32
    return %arg0, %arg1, %c0_i32, %c0_i32_0 : i32, i32, i32, i32
  }
  func.func @transform_1(%arg0: i32, %arg1: i32) -> (i32, i32) {
    %c0_i32 = arith.constant 0 : i32
    %c0_i32_0 = arith.constant 0 : i32
    %c0_i32_1 = arith.constant 0 : i32
    return %c0_i32, %c0_i32_0 : i32, i32
  }
  func.func @transform_2(%arg0: i32, %arg1: i32) -> (i32, i32) {
    %c0_i32 = arith.constant 0 : i32
    %c0_i32_0 = arith.constant 0 : i32
    %c0_i32_1 = arith.constant 0 : i32
    return %c0_i32, %c0_i32_0 : i32, i32
  }
  func.func @transform_3(%arg0: i32, %arg1: i32) -> (i32, i32) {
    %c0_i32 = arith.constant 0 : i32
    %c0_i32_0 = arith.constant 0 : i32
    %c0_i32_1 = arith.constant 0 : i32
    return %c0_i32, %c0_i32_0 : i32, i32
  }
  func.func @transform_4(%arg0: i32, %arg1: i32) -> (i32, i32, i32) {
    %c0_i32 = arith.constant 0 : i32
    %c0_i32_0 = arith.constant 0 : i32
    return %arg0, %c0_i32, %arg1 : i32, i32, i32
  }
  func.func @transform_5(%arg0: i32, %arg1: i32) -> (i32, i32, i32) {
    %c0_i32 = arith.constant 0 : i32
    %c0_i32_0 = arith.constant 0 : i32
    %c0_i32_1 = arith.constant 0 : i32
    return %arg0, %c0_i32, %c0_i32_0 : i32, i32, i32
  }
}

</mosaic_0001>

<llo_original>
// kernel: conv_block_tanh.3
$region0: #{conv_block_tanh.3}
  #allocation0 [shape = 'u32[]', space=smem, size = 0x4, offset = 0x4, fixed_abs, tag = 'smem constant byte address 0x4 - core index']
  #allocation1 [shape = 'u32[144,128]{1,0:T(1,128)}', space=vmem, size = 0x12000, scoped, tag = 'internal scratch']
  %s0 = inlined_call_operand.vmem [shape: f32[2,8,16,18], index: 0, kind: input, shape index: {}]
  %s1 = inlined_call_operand.vmem [shape: f32[8,1,1], index: 1, kind: input, shape index: {}]
  %s2 = inlined_call_operand.vmem [shape: f32[8,1,1], index: 2, kind: input, shape index: {}]
  %s3 = inlined_call_operand.hbm [shape: f32[2,8,16,16], index: 3, kind: output, shape index: {}]
  %s4 = sld [smem:[#allocation0]]
  $region45: #{conv_block_tanh.3} parent=0
    _
  %s6 = ssub.s32 1, %s4
  %s7 = scalar_select 0, %s6, %s4
  $region1: #{conv_block_tanh.3} parent=0
    #allocation2 [shape = 'u8[131072]{0}', space=vmem, size = 0x20000, scoped, tag = 'output window, operand 0']
    #allocation3 [shape = 's32[2]{0}', space=sflag, size = 0x8, scoped, tag = 'scoped memory for conv_block_tanh.3']
    %8 = vsyncpa [#allocation3], 0
    %s9 = scalar_lea.sflag [#allocation3], 1
    %10 = vsyncpa %s9, 0
    loop: start=0, step=1, limit=4
    $region2: #{conv_block_tanh.3} parent=1 // loop_pre_header
      _
    $region3: #{conv_block_tanh.3} parent=1 // loop_header
      %s12 = sphi 0, %s16
      %p13 = scmp.ge.s32.totalorder %s12, 4
      %s19 = sphi 0, %s31
      %s20 = sphi 0, %s27
      %s21 = sphi 0, %s19
      %s22 = sphi 0, %s20
      %s23 = sphi 0, %s21
      %s24 = sphi 0, %s22
      %s36 = sphi 0, %s38
      %s39 = sphi 0, %s36
      %s40 = sphi 0, %s39
      %s56 = sphi 0, %s40
      %s60 = sphi 0, %s60
      %s62 = sphi 0, %s60
      %s63 = sphi 0, %s62
      %s77 = sphi 0, %s63
      %s81 = sphi 0, %s81
      %s83 = sphi 0, %s81
      %s84 = sphi 0, %s83
      %s98 = sphi 0, %s84
      %s106 = sphi 0, %s108
      %s109 = sphi 0, %s106
      %s110 = sphi 0, %s109
      %s126 = sphi 0, %s110
    $region4: #{conv_block_tanh.3} parent=1 // loop_header_branch
      %15 = sbr.rel (%p13) target = $region8
    $region5: #{conv_block_tanh.3} parent=1 // loop_body
      %s17 = ssub.s32 %s12, 1
      %s18 = ssub.s32 %s12, 2
      %s25 = sadd.s32 1, %s20
      %p26 = scmp.ge.s32.totalorder %s25, 1
      %s27 = scalar_select %p26, 0, %s25
      %s28 = sadd.s32 1, %s19
      %s29 = scalar_select %p26, %s28, %s19
      %p30 = scmp.ge.s32.totalorder %s29, 2
      %s31 = scalar_select %p30, 0, %s29
      %s32 = ssub.s32 %s19, %s31
      %s33 = ssub.s32 %s20, %s27
      %s34 = sor.u32 %s32, %s33
      %p35 = scmp.eq.s32.totalorder %s34, 0
      %s37 = sadd.s32 %s36, 1
      %s38 = scalar_select %p35, %s36, %s37
      %p41 = pneg %p35
      %p42 = scmp.eq.s32.totalorder %s12, 1
      %p43 = por %p41, %p42
      %p44 = scmp.ne.s32.totalorder %s36, %s39
      %p45 = scmp.eq.s32.totalorder %s12, 0
      %p46 = por %p44, %p45
      %p47 = scmp.ne.s32.totalorder %s36, %s39
      %p48 = scmp.eq.s32.totalorder %s17, 1
      %p49 = por %p47, %p48
      %p50 = scmp.ne.s32.totalorder %s39, %s40
      %p51 = scmp.eq.s32.totalorder %s17, 0
      %p52 = por %p50, %p51
      %p53 = scmp.ne.s32.totalorder %s39, %s40
      %p54 = scmp.eq.s32.totalorder %s18, 1
      %p55 = por %p53, %p54
      %p57 = scmp.ne.s32.totalorder %s40, %s56
      %p58 = scmp.eq.s32.totalorder %s18, 0
      %p59 = por %p57, %p58
      %s61 = sadd.s32 %s60, 1
      %p64 = scmp.eq.s32.totalorder %s12, 1
      %p65 = scmp.ne.s32.totalorder %s60, %s62
      %p66 = scmp.eq.s32.totalorder %s12, 0
      %p67 = por %p65, %p66
      %p68 = scmp.ne.s32.totalorder %s60, %s62
      %p69 = scmp.eq.s32.totalorder %s17, 1
      %p70 = por %p68, %p69
      %p71 = scmp.ne.s32.totalorder %s62, %s63
      %p72 = scmp.eq.s32.totalorder %s17, 0
      %p73 = por %p71, %p72
      %p74 = scmp.ne.s32.totalorder %s62, %s63
      %p75 = scmp.eq.s32.totalorder %s18, 1
      %p76 = por %p74, %p75
      %p78 = scmp.ne.s32.totalorder %s63, %s77
      %p79 = scmp.eq.s32.totalorder %s18, 0
      %p80 = por %p78, %p79
      %s82 = sadd.s32 %s81, 1
      %p85 = scmp.eq.s32.totalorder %s12, 1
      %p86 = scmp.ne.s32.totalorder %s81, %s83
      %p87 = scmp.eq.s32.totalorder %s12, 0
      %p88 = por %p86, %p87
      %p89 = scmp.ne.s32.totalorder %s81, %s83
      %p90 = scmp.eq.s32.totalorder %s17, 1
      %p91 = por %p89, %p90
      %p92 = scmp.ne.s32.totalorder %s83, %s84
      %p93 = scmp.eq.s32.totalorder %s17, 0
      %p94 = por %p92, %p93
      %p95 = scmp.ne.s32.totalorder %s83, %s84
      %p96 = scmp.eq.s32.totalorder %s18, 1
      %p97 = por %p95, %p96
      %p99 = scmp.ne.s32.totalorder %s84, %s98
      %p100 = scmp.eq.s32.totalorder %s18, 0
      %p101 = por %p99, %p100
      %s102 = ssub.s32 %s19, %s31
      %s103 = ssub.s32 %s20, %s27
      %s104 = sor.u32 %s102, %s103
      %p105 = scmp.eq.s32.totalorder %s104, 0
      %s107 = sadd.s32 %s106, 1
      %s108 = scalar_select %p105, %s106, %s107
      %p111 = pneg %p105
      %p112 = scmp.eq.s32.totalorder %s12, 1
      %p113 = por %p111, %p112
      %p114 = scmp.ne.s32.totalorder %s106, %s109
      %p115 = scmp.eq.s32.totalorder %s12, 0
      %p116 = por %p114, %p115
      %p117 = scmp.ne.s32.totalorder %s106, %s109
      %p118 = scmp.eq.s32.totalorder %s17, 1
      %p119 = por %p117, %p118
      %p120 = scmp.ne.s32.totalorder %s109, %s110
      %p121 = scmp.eq.s32.totalorder %s17, 0
      %p122 = por %p120, %p121
      %p123 = scmp.ne.s32.totalorder %s109, %s110
      %p124 = scmp.eq.s32.totalorder %s18, 1
      %p125 = por %p123, %p124
      %p127 = scmp.ne.s32.totalorder %s110, %s126
      %p128 = scmp.eq.s32.totalorder %s18, 0
      %p129 = por %p127, %p128
      %p130 = scmp.le.s32.totalorder 1, %s12
      %p131 = scmp.lt.s32.totalorder %s12, 3
      %p132 = pnand %p130, %p131
      %p133 = pneg %p132
      // Predicated region
      $region9: #{conv_block_tanh.3} parent=5 // pred_check
        _
      $region10: #{conv_block_tanh.3} parent=5 // pred_check_branch
        %135 = sbr.rel (%p132) target = $region12
      $region11: #{conv_block_tanh.3} parent=5 // pred_region
        %s136 = ssub.s32 %s12, 1
        // Predicated region
        $region13: #{conv_block_tanh.3} parent=11 // pred_check
          %p137 = pneg %p73
        $region14: #{conv_block_tanh.3} parent=11 // pred_check_branch
          %139 = sbr.rel (%p137) target = $region16
        $region15: #{conv_block_tanh.3} parent=11 // pred_region
          _
        $region16: #{conv_block_tanh.3} parent=11 // pred_fallthru
          _
        // Predicated region
        $region17: #{conv_block_tanh.3} parent=11 // pred_check
          %p140 = pneg %p94
        $region18: #{conv_block_tanh.3} parent=11 // pred_check_branch
          %142 = sbr.rel (%p140) target = $region20
        $region19: #{conv_block_tanh.3} parent=11 // pred_region
          _
        $region20: #{conv_block_tanh.3} parent=11 // pred_fallthru
          _
      $region12: #{conv_block_tanh.3} parent=5 // pred_fallthru
        _
      %p143 = scmp.lt.s32.totalorder %s12, 2
      // Predicated region
      $region21: #{conv_block_tanh.3} parent=5 // pred_check
        %p144 = pneg %p143
      $region22: #{conv_block_tanh.3} parent=5 // pred_check_branch
        %146 = sbr.rel (%p144) target = $region24
      $region23: #{conv_block_tanh.3} parent=5 // pred_region
        // Predicated region
        $region25: #{conv_block_tanh.3} parent=23 // pred_check
          %p147 = pneg %p46
        $region26: #{conv_block_tanh.3} parent=23 // pred_check_branch
          %149 = sbr.rel (%p147) target = $region28
        $region27: #{conv_block_tanh.3} parent=23 // pred_region
          %s150 = smul.u32 2, %s20
          %p151 = scmp.lt.s32.totalorder %s19, 1
          %s152 = scalar_select %p151, %s19, 1
          %p153 = scmp.lt.s32.totalorder %s150, 1
          %s154 = scalar_select %p153, %s150, 1
          %s155 = smul.addr %s152, 16
          %s156 = sadd.s32 %s154, %s155
          %s157 = smul.addr %s156, 8
          %s158 = scalar_lea.vmem %s0, %s157
          %s159 = smul.u32 2, %s20
        $region28: #{conv_block_tanh.3} parent=23 // pred_fallthru
          _
      $region24: #{conv_block_tanh.3} parent=5 // pred_fallthru
        _
      %p160 = scmp.le.s32.totalorder 1, %s12
      %p161 = scmp.lt.s32.totalorder %s12, 3
      %p162 = pnand %p160, %p161
      %p163 = pneg %p162
      // Predicated region
      $region29: #{conv_block_tanh.3} parent=5 // pred_check
        _
      $region30: #{conv_block_tanh.3} parent=5 // pred_check_branch
        %165 = sbr.rel (%p162) target = $region32
      $region31: #{conv_block_tanh.3} parent=5 // pred_region
        %s166 = ssub.s32 %s12, 1
        %s167 = smul.u32 2, %s22
        %p168 = scmp.lt.s32.totalorder %s21, 1
        %s169 = scalar_select %p168, %s21, 1
        %p170 = scmp.lt.s32.totalorder %s167, 1
        %s171 = scalar_select %p170, %s167, 1
        %s172 = smul.addr %s169, 16
        %s173 = sadd.s32 %s171, %s172
        %s174 = smul.addr %s173, 8
        %s175 = scalar_lea.vmem %s0, %s174
        %p176 = pneg %p52
        %p177 = pneg %p49
        %p178 = pneg %p73
        %p179 = pneg %p70
        %p180 = pneg %p94
        %p181 = pneg %p91
        %p182 = pneg %p122
        %p183 = pneg %p119
        %s184 = sand.u32 %s109, 1
        %s185 = scalar_lea.sflag [#allocation3], %s184
        %s186 = sand.u32 %s109, 1
        %s187 = smul.addr %s186, 128
        %s188 = scalar_lea.vmem [#allocation2], %s187
        %s189 = smul.u32 2, %s22
        %p190 = scmp.lt.s32.totalorder %s21, 1
        %s191 = scalar_select %p190, %s21, 1
        %p192 = scmp.lt.s32.totalorder %s189, 1
        %s193 = scalar_select %p192, %s189, 1
        %s194 = smul.addr %s191, 16
        %s195 = sadd.s32 %s193, %s194
        %s196 = smul.addr %s195, 8
        %s197 = scalar_lea.vmem %s0, %s196
        %s198 = smul.u32 2, %s22
        %s199 = smul.u32 2, %s22
        %v200 = vld [vmem:[%s197] sm:$0xff]
        %v201 = vld [vmem:[%s197 + $0x8] sm:$0xff]
        %v202 = vld [vmem:[%s197 + $0x10] sm:$0xff]
        %v203 = vld [vmem:[%s197 + $0x18] sm:$0xff]
        %v204 = vld [vmem:[%s197 + $0x20] sm:$0xff]
        %v205 = vld [vmem:[%s197 + $0x28] sm:$0xff]
        %v206 = vld [vmem:[%s197 + $0x30] sm:$0xff]
        %v207 = vld [vmem:[%s197 + $0x38] sm:$0xff]
        %v208 = vld [vmem:[%s197 + $0x40] sm:$0xff]
        %v209 = vld [vmem:[%s197 + $0x48] sm:$0xff]
        %v210 = vld [vmem:[%s197 + $0x50] sm:$0xff]
        %v211 = vld [vmem:[%s197 + $0x58] sm:$0xff]
        %v212 = vld [vmem:[%s197 + $0x60] sm:$0xff]
        %v213 = vld [vmem:[%s197 + $0x68] sm:$0xff]
        %v214 = vld [vmem:[%s197 + $0x70] sm:$0xff]
        %v215 = vld [vmem:[%s197 + $0x78] sm:$0xff]
        %v216 = vld [vmem:[%s1] sm:$0x1]
        %v217 = vld [vmem:[%s1 + $0x1] sm:$0x1]
        %v218 = vld [vmem:[%s1 + $0x2] sm:$0x1]
        %v219 = vld [vmem:[%s1 + $0x3] sm:$0x1]
        %v220 = vld [vmem:[%s1 + $0x4] sm:$0x1]
        %v221 = vld [vmem:[%s1 + $0x5] sm:$0x1]
        %v222 = vld [vmem:[%s1 + $0x6] sm:$0x1]
        %v223 = vld [vmem:[%s1 + $0x7] sm:$0x1]
        %v232 = vlaneseq
        %v233 = vshrl.u32 %v232, 7
        %v234 = vsub.s32 0, %v233
        %v235 = vrot.slane %v216, %v234
        %v236 = vlaneseq
        %v237 = vshrl.u32 %v236, 7
        %v238 = vsub.s32 0, %v237
        %v239 = vrot.slane %v217, %v238
        %v240 = vlaneseq
        %v241 = vshrl.u32 %v240, 7
        %v242 = vsub.s32 0, %v241
        %v243 = vrot.slane %v218, %v242
        %v244 = vlaneseq
        %v245 = vshrl.u32 %v244, 7
        %v246 = vsub.s32 0, %v245
        %v247 = vrot.slane %v219, %v246
        %v248 = vlaneseq
        %v249 = vshrl.u32 %v248, 7
        %v250 = vsub.s32 0, %v249
        %v251 = vrot.slane %v220, %v250
        %v252 = vlaneseq
        %v253 = vshrl.u32 %v252, 7
        %v254 = vsub.s32 0, %v253
        %v255 = vrot.slane %v221, %v254
        %v256 = vlaneseq
        %v257 = vshrl.u32 %v256, 7
        %v258 = vsub.s32 0, %v257
        %v259 = vrot.slane %v222, %v258
        %v260 = vlaneseq
        %v261 = vshrl.u32 %v260, 7
        %v262 = vsub.s32 0, %v261
        %v263 = vrot.slane %v223, %v262
        %264 = vset.pattern.permute.xlu0 0
        %265 = vperm.xlu0 %264, %v235
        %v266 = vpop.permute.xlu0 %265
        %268 = vset.pattern.permute.xlu0 0
        %269 = vperm.xlu0 %268, %v239
        %v270 = vpop.permute.xlu0 %269
        %272 = vset.pattern.permute.xlu0 0
        %273 = vperm.xlu0 %272, %v243
        %v274 = vpop.permute.xlu0 %273
        %276 = vset.pattern.permute.xlu0 0
        %277 = vperm.xlu0 %276, %v247
        %v278 = vpop.permute.xlu0 %277
        %280 = vset.pattern.permute.xlu0 0
        %281 = vperm.xlu0 %280, %v251
        %v282 = vpop.permute.xlu0 %281
        %284 = vset.pattern.permute.xlu0 0
        %285 = vperm.xlu0 %284, %v255
        %v286 = vpop.permute.xlu0 %285
        %288 = vset.pattern.permute.xlu0 0
        %289 = vperm.xlu0 %288, %v259
        %v290 = vpop.permute.xlu0 %289
        %292 = vset.pattern.permute.xlu0 0
        %293 = vperm.xlu0 %292, %v263
        %v294 = vpop.permute.xlu0 %293
        %v296 = vmul.f32 %v200, %v266
        %v297 = vmul.f32 %v201, %v266
        %v298 = vmul.f32 %v202, %v270
        %v299 = vmul.f32 %v203, %v270
        %v300 = vmul.f32 %v204, %v274
        %v301 = vmul.f32 %v205, %v274
        %v302 = vmul.f32 %v206, %v278
        %v303 = vmul.f32 %v207, %v278
        %v304 = vmul.f32 %v208, %v282
        %v305 = vmul.f32 %v209, %v282
        %v306 = vmul.f32 %v210, %v286
        %v307 = vmul.f32 %v211, %v286
        %v308 = vmul.f32 %v212, %v290
        %v309 = vmul.f32 %v213, %v290
        %v310 = vmul.f32 %v214, %v294
        %v311 = vmul.f32 %v215, %v294
        %v312 = vld [vmem:[%s2] sm:$0x1]
        %v313 = vld [vmem:[%s2 + $0x1] sm:$0x1]
        %v314 = vld [vmem:[%s2 + $0x2] sm:$0x1]
        %v315 = vld [vmem:[%s2 + $0x3] sm:$0x1]
        %v316 = vld [vmem:[%s2 + $0x4] sm:$0x1]
        %v317 = vld [vmem:[%s2 + $0x5] sm:$0x1]
        %v318 = vld [vmem:[%s2 + $0x6] sm:$0x1]
        %v319 = vld [vmem:[%s2 + $0x7] sm:$0x1]
        %v328 = vlaneseq
        %v329 = vshrl.u32 %v328, 7
        %v330 = vsub.s32 0, %v329
        %v331 = vrot.slane %v312, %v330
        %v332 = vlaneseq
        %v333 = vshrl.u32 %v332, 7
        %v334 = vsub.s32 0, %v333
        %v335 = vrot.slane %v313, %v334
        %v336 = vlaneseq
        %v337 = vshrl.u32 %v336, 7
        %v338 = vsub.s32 0, %v337
        %v339 = vrot.slane %v314, %v338
        %v340 = vlaneseq
        %v341 = vshrl.u32 %v340, 7
        %v342 = vsub.s32 0, %v341
        %v343 = vrot.slane %v315, %v342
        %v344 = vlaneseq
        %v345 = vshrl.u32 %v344, 7
        %v346 = vsub.s32 0, %v345
        %v347 = vrot.slane %v316, %v346
        %v348 = vlaneseq
        %v349 = vshrl.u32 %v348, 7
        %v350 = vsub.s32 0, %v349
        %v351 = vrot.slane %v317, %v350
        %v352 = vlaneseq
        %v353 = vshrl.u32 %v352, 7
        %v354 = vsub.s32 0, %v353
        %v355 = vrot.slane %v318, %v354
        %v356 = vlaneseq
        %v357 = vshrl.u32 %v356, 7
        %v358 = vsub.s32 0, %v357
        %v359 = vrot.slane %v319, %v358
        %360 = vset.pattern.permute.xlu0 0
        %361 = vperm.xlu0 %360, %v331
        %v362 = vpop.permute.xlu0 %361
        %364 = vset.pattern.permute.xlu0 0
        %365 = vperm.xlu0 %364, %v335
        %v366 = vpop.permute.xlu0 %365
        %368 = vset.pattern.permute.xlu0 0
        %369 = vperm.xlu0 %368, %v339
        %v370 = vpop.permute.xlu0 %369
        %372 = vset.pattern.permute.xlu0 0
        %373 = vperm.xlu0 %372, %v343
        %v374 = vpop.permute.xlu0 %373
        %376 = vset.pattern.permute.xlu0 0
        %377 = vperm.xlu0 %376, %v347
        %v378 = vpop.permute.xlu0 %377
        %380 = vset.pattern.permute.xlu0 0
        %381 = vperm.xlu0 %380, %v351
        %v382 = vpop.permute.xlu0 %381
        %384 = vset.pattern.permute.xlu0 0
        %385 = vperm.xlu0 %384, %v355
        %v386 = vpop.permute.xlu0 %385
        %388 = vset.pattern.permute.xlu0 0
        %389 = vperm.xlu0 %388, %v359
        %v390 = vpop.permute.xlu0 %389
        %v392 = vadd.f32 %v296, %v362
        %v393 = vadd.f32 %v297, %v362
        %v394 = vadd.f32 %v298, %v366
        %v395 = vadd.f32 %v299, %v366
        %v396 = vadd.f32 %v300, %v370
        %v397 = vadd.f32 %v301, %v370
        %v398 = vadd.f32 %v302, %v374
        %v399 = vadd.f32 %v303, %v374
        %v400 = vadd.f32 %v304, %v378
        %v401 = vadd.f32 %v305, %v378
        %v402 = vadd.f32 %v306, %v382
        %v403 = vadd.f32 %v307, %v382
        %v404 = vadd.f32 %v308, %v386
        %v405 = vadd.f32 %v309, %v386
        %v406 = vadd.f32 %v310, %v390
        %v407 = vadd.f32 %v311, %v390
        %v408 = vtanh.pop %v392
        %v409 = vtanh.pop %v393
        %v410 = vtanh.pop %v394
        %v411 = vtanh.pop %v395
        %v412 = vtanh.pop %v396
        %v413 = vtanh.pop %v397
        %v414 = vtanh.pop %v398
        %v415 = vtanh.pop %v399
        %v416 = vtanh.pop %v400
        %v417 = vtanh.pop %v401
        %v418 = vtanh.pop %v402
        %v419 = vtanh.pop %v403
        %v420 = vtanh.pop %v404
        %v421 = vtanh.pop %v405
        %v422 = vtanh.pop %v406
        %v423 = vtanh.pop %v407
        %vm424 = vcmask 130048
        %425 = vst.msk [vmem:[%s188] sm:$0xff] %vm424, %v408
        %426 = vst.msk [vmem:[%s188 + $0x8] sm:$0xff] %vm424, %v409
        %427 = vst.msk [vmem:[%s188 + $0x10] sm:$0xff] %vm424, %v410
        %428 = vst.msk [vmem:[%s188 + $0x18] sm:$0xff] %vm424, %v411
        %429 = vst.msk [vmem:[%s188 + $0x20] sm:$0xff] %vm424, %v412
        %430 = vst.msk [vmem:[%s188 + $0x28] sm:$0xff] %vm424, %v413
        %431 = vst.msk [vmem:[%s188 + $0x30] sm:$0xff] %vm424, %v414
        %432 = vst.msk [vmem:[%s188 + $0x38] sm:$0xff] %vm424, %v415
        %433 = vst.msk [vmem:[%s188 + $0x40] sm:$0xff] %vm424, %v416
        %434 = vst.msk [vmem:[%s188 + $0x48] sm:$0xff] %vm424, %v417
        %435 = vst.msk [vmem:[%s188 + $0x50] sm:$0xff] %vm424, %v418
        %436 = vst.msk [vmem:[%s188 + $0x58] sm:$0xff] %vm424, %v419
        %437 = vst.msk [vmem:[%s188 + $0x60] sm:$0xff] %vm424, %v420
        %438 = vst.msk [vmem:[%s188 + $0x68] sm:$0xff] %vm424, %v421
        %439 = vst.msk [vmem:[%s188 + $0x70] sm:$0xff] %vm424, %v422
        %440 = vst.msk [vmem:[%s188 + $0x78] sm:$0xff] %vm424, %v423
        %s441 = sand.u32 %s109, 1
        %s442 = scalar_lea.sflag [#allocation3], %s441
        %s443 = sand.u32 %s109, 1
        %s444 = smul.addr %s443, 128
        %s445 = scalar_lea.vmem [#allocation2], %s444
        // Predicated region
        $region33: #{conv_block_tanh.3} parent=31 // pred_check
          %p446 = pneg %p119
        $region34: #{conv_block_tanh.3} parent=31 // pred_check_branch
          %448 = sbr.rel (%p446) target = $region36
        $region35: #{conv_block_tanh.3} parent=31 // pred_region
          %s449 = smul.u32 2, %s22
          %s451 = ssub.s32 2048, 2048
          %452 = vsyncadd %s442, %s451
          %s453 = smul.addr %s21, 16
          %s454 = sadd.s32 %s449, %s453
          %s455 = smul.addr %s454, 128
          %s456 = scalar_lea.hbm %s3, %s455
          %s457 = sshll.u32 %s445, 4
          %s458 = int_to_ptr.vmem [resolvable:$true] %s457
          %463 = dma.vmem_to_hbm [thread:$0]  %s458, 2048, %s456, %s442, 128, 128, 8
        $region36: #{conv_block_tanh.3} parent=31 // pred_fallthru
          _
      $region32: #{conv_block_tanh.3} parent=5 // pred_fallthru
        _
      %p464 = scmp.le.s32.totalorder 2, %s12
      // Predicated region
      $region37: #{conv_block_tanh.3} parent=5 // pred_check
        %p465 = pneg %p464
      $region38: #{conv_block_tanh.3} parent=5 // pred_check_branch
        %467 = sbr.rel (%p465) target = $region40
      $region39: #{conv_block_tanh.3} parent=5 // pred_region
        %s468 = ssub.s32 %s12, 2
        // Predicated region
        $region41: #{conv_block_tanh.3} parent=39 // pred_check
          %p469 = pneg %p125
        $region42: #{conv_block_tanh.3} parent=39 // pred_check_branch
          %471 = sbr.rel (%p469) target = $region44
        $region43: #{conv_block_tanh.3} parent=39 // pred_region
          %s472 = sand.u32 %s110, 1
          %s473 = scalar_lea.sflag [#allocation3], %s472
          %s474 = sand.u32 %s110, 1
          %s475 = smul.addr %s474, 128
          %s476 = scalar_lea.vmem [#allocation2], %s475
          %477 = dma.done %s473, 2048
        $region44: #{conv_block_tanh.3} parent=39 // pred_fallthru
          _
      $region40: #{conv_block_tanh.3} parent=5 // pred_fallthru
        _
    $region6: #{conv_block_tanh.3} parent=1 // loop_footer
      %s16 = sadd.s32 1, %s12
    $region7: #{conv_block_tanh.3} parent=1 // loop_footer_branch
      %11 = sbr.rel target = $region3
    $region8: #{conv_block_tanh.3} parent=1 // loop_exit
      _
    %478 = vsyncpa [#allocation3], 1
    %s479 = scalar_lea.sflag [#allocation3], 1
    %480 = vsyncpa %s479, 1

// kernel: conv_block_tanh.2
$region0: #{conv_block_tanh.2}
  #allocation0 [shape = 'u32[]', space=smem, size = 0x4, offset = 0x4, fixed_abs, tag = 'smem constant byte address 0x4 - core index']
  #allocation1 [shape = 'u32[144,128]{1,0:T(1,128)}', space=vmem, size = 0x12000, scoped, tag = 'internal scratch']
  %s0 = inlined_call_operand.vmem [shape: f32[2,1,4,326], index: 0, kind: input, shape index: {}]
  %s1 = inlined_call_operand.vmem [shape: f32[8,36], index: 1, kind: input, shape index: {}]
  %s2 = inlined_call_operand.vmem [shape: f32[8,1], index: 2, kind: input, shape index: {}]
  %s3 = inlined_call_operand.vmem [shape: f32[1,288], index: 3, kind: input, shape index: {}]
  %s4 = inlined_call_operand.vmem [shape: f32[2,8,288], index: 4, kind: output, shape index: {0}]
  %s5 = inlined_call_operand.vmem [shape: f32[2,2,8], index: 5, kind: output, shape index: {1}]
  %6 = xla_tuple %s4, %s5
  %s7 = sld [smem:[#allocation0]]
  $region65: #{conv_block_tanh.2} parent=0
    _
  %s9 = ssub.s32 1, %s7
  %s10 = scalar_select 0, %s9, %s7
  loop: start=0, step=1, limit=4
  $region2: #{conv_block_tanh.2} parent=0 // loop_pre_header
    _
  $region3: #{conv_block_tanh.2} parent=0 // loop_header
    %s12 = sphi 0, %s16
    %p13 = scmp.ge.s32.totalorder %s12, 4
    %s19 = sphi 0, %s31
    %s20 = sphi 0, %s27
    %s21 = sphi 0, %s19
    %s22 = sphi 0, %s20
    %s23 = sphi 0, %s21
    %s24 = sphi 0, %s22
    %s36 = sphi 0, %s38
    %s39 = sphi 0, %s36
    %s40 = sphi 0, %s39
    %s56 = sphi 0, %s40
    %s60 = sphi 0, %s60
    %s62 = sphi 0, %s60
    %s63 = sphi 0, %s62
    %s77 = sphi 0, %s63
    %s81 = sphi 0, %s81
    %s83 = sphi 0, %s81
    %s84 = sphi 0, %s83
    %s98 = sphi 0, %s84
    %s102 = sphi 0, %s102
    %s104 = sphi 0, %s102
    %s105 = sphi 0, %s104
    %s119 = sphi 0, %s105
    %s127 = sphi 0, %s129
    %s130 = sphi 0, %s127
    %s131 = sphi 0, %s130
    %s147 = sphi 0, %s131
    %s153 = sphi 0, %s155
    %s156 = sphi 0, %s153
    %s157 = sphi 0, %s156
    %s173 = sphi 0, %s157
  $region4: #{conv_block_tanh.2} parent=0 // loop_header_branch
    %15 = sbr.rel (%p13) target = $region8
  $region5: #{conv_block_tanh.2} parent=0 // loop_body
    %s17 = ssub.s32 %s12, 1
    %s18 = ssub.s32 %s12, 2
    %s25 = sadd.s32 1, %s20
    %p26 = scmp.ge.s32.totalorder %s25, 1
    %s27 = scalar_select %p26, 0, %s25
    %s28 = sadd.s32 1, %s19
    %s29 = scalar_select %p26, %s28, %s19
    %p30 = scmp.ge.s32.totalorder %s29, 2
    %s31 = scalar_select %p30, 0, %s29
    %s32 = ssub.s32 %s19, %s31
    %s33 = ssub.s32 %s20, %s27
    %s34 = sor.u32 %s32, %s33
    %p35 = scmp.eq.s32.totalorder %s34, 0
    %s37 = sadd.s32 %s36, 1
    %s38 = scalar_select %p35, %s36, %s37
    %p41 = pneg %p35
    %p42 = scmp.eq.s32.totalorder %s12, 1
    %p43 = por %p41, %p42
    %p44 = scmp.ne.s32.totalorder %s36, %s39
    %p45 = scmp.eq.s32.totalorder %s12, 0
    %p46 = por %p44, %p45
    %p47 = scmp.ne.s32.totalorder %s36, %s39
    %p48 = scmp.eq.s32.totalorder %s17, 1
    %p49 = por %p47, %p48
    %p50 = scmp.ne.s32.totalorder %s39, %s40
    %p51 = scmp.eq.s32.totalorder %s17, 0
    %p52 = por %p50, %p51
    %p53 = scmp.ne.s32.totalorder %s39, %s40
    %p54 = scmp.eq.s32.totalorder %s18, 1
    %p55 = por %p53, %p54
    %p57 = scmp.ne.s32.totalorder %s40, %s56
    %p58 = scmp.eq.s32.totalorder %s18, 0
    %p59 = por %p57, %p58
    %s61 = sadd.s32 %s60, 1
    %p64 = scmp.eq.s32.totalorder %s12, 1
    %p65 = scmp.ne.s32.totalorder %s60, %s62
    %p66 = scmp.eq.s32.totalorder %s12, 0
    %p67 = por %p65, %p66
    %p68 = scmp.ne.s32.totalorder %s60, %s62
    %p69 = scmp.eq.s32.totalorder %s17, 1
    %p70 = por %p68, %p69
    %p71 = scmp.ne.s32.totalorder %s62, %s63
    %p72 = scmp.eq.s32.totalorder %s17, 0
    %p73 = por %p71, %p72
    %p74 = scmp.ne.s32.totalorder %s62, %s63
    %p75 = scmp.eq.s32.totalorder %s18, 1
    %p76 = por %p74, %p75
    %p78 = scmp.ne.s32.totalorder %s63, %s77
    %p79 = scmp.eq.s32.totalorder %s18, 0
    %p80 = por %p78, %p79
    %s82 = sadd.s32 %s81, 1
    %p85 = scmp.eq.s32.totalorder %s12, 1
    %p86 = scmp.ne.s32.totalorder %s81, %s83
    %p87 = scmp.eq.s32.totalorder %s12, 0
    %p88 = por %p86, %p87
    %p89 = scmp.ne.s32.totalorder %s81, %s83
    %p90 = scmp.eq.s32.totalorder %s17, 1
    %p91 = por %p89, %p90
    %p92 = scmp.ne.s32.totalorder %s83, %s84
    %p93 = scmp.eq.s32.totalorder %s17, 0
    %p94 = por %p92, %p93
    %p95 = scmp.ne.s32.totalorder %s83, %s84
    %p96 = scmp.eq.s32.totalorder %s18, 1
    %p97 = por %p95, %p96
    %p99 = scmp.ne.s32.totalorder %s84, %s98
    %p100 = scmp.eq.s32.totalorder %s18, 0
    %p101 = por %p99, %p100
    %s103 = sadd.s32 %s102, 1
    %p106 = scmp.eq.s32.totalorder %s12, 1
    %p107 = scmp.ne.s32.totalorder %s102, %s104
    %p108 = scmp.eq.s32.totalorder %s12, 0
    %p109 = por %p107, %p108
    %p110 = scmp.ne.s32.totalorder %s102, %s104
    %p111 = scmp.eq.s32.totalorder %s17, 1
    %p112 = por %p110, %p111
    %p113 = scmp.ne.s32.totalorder %s104, %s105
    %p114 = scmp.eq.s32.totalorder %s17, 0
    %p115 = por %p113, %p114
    %p116 = scmp.ne.s32.totalorder %s104, %s105
    %p117 = scmp.eq.s32.totalorder %s18, 1
    %p118 = por %p116, %p117
    %p120 = scmp.ne.s32.totalorder %s105, %s119
    %p121 = scmp.eq.s32.totalorder %s18, 0
    %p122 = por %p120, %p121
    %s123 = ssub.s32 %s19, %s31
    %s124 = ssub.s32 %s20, %s27
    %s125 = sor.u32 %s123, %s124
    %p126 = scmp.eq.s32.totalorder %s125, 0
    %s128 = sadd.s32 %s127, 1
    %s129 = scalar_select %p126, %s127, %s128
    %p132 = pneg %p126
    %p133 = scmp.eq.s32.totalorder %s12, 1
    %p134 = por %p132, %p133
    %p135 = scmp.ne.s32.totalorder %s127, %s130
    %p136 = scmp.eq.s32.totalorder %s12, 0
    %p137 = por %p135, %p136
    %p138 = scmp.ne.s32.totalorder %s127, %s130
    %p139 = scmp.eq.s32.totalorder %s17, 1
    %p140 = por %p138, %p139
    %p141 = scmp.ne.s32.totalorder %s130, %s131
    %p142 = scmp.eq.s32.totalorder %s17, 0
    %p143 = por %p141, %p142
    %p144 = scmp.ne.s32.totalorder %s130, %s131
    %p145 = scmp.eq.s32.totalorder %s18, 1
    %p146 = por %p144, %p145
    %p148 = scmp.ne.s32.totalorder %s131, %s147
    %p149 = scmp.eq.s32.totalorder %s18, 0
    %p150 = por %p148, %p149
    %s151 = ssub.s32 %s19, %s31
    %p152 = scmp.eq.s32.totalorder %s151, 0
    %s154 = sadd.s32 %s153, 1
    %s155 = scalar_select %p152, %s153, %s154
    %p158 = pneg %p152
    %p159 = scmp.eq.s32.totalorder %s12, 1
    %p160 = por %p158, %p159
    %p161 = scmp.ne.s32.totalorder %s153, %s156
    %p162 = scmp.eq.s32.totalorder %s12, 0
    %p163 = por %p161, %p162
    %p164 = scmp.ne.s32.totalorder %s153, %s156
    %p165 = scmp.eq.s32.totalorder %s17, 1
    %p166 = por %p164, %p165
    %p167 = scmp.ne.s32.totalorder %s156, %s157
    %p168 = scmp.eq.s32.totalorder %s17, 0
    %p169 = por %p167, %p168
    %p170 = scmp.ne.s32.totalorder %s156, %s157
    %p171 = scmp.eq.s32.totalorder %s18, 1
    %p172 = por %p170, %p171
    %p174 = scmp.ne.s32.totalorder %s157, %s173
    %p175 = scmp.eq.s32.totalorder %s18, 0
    %p176 = por %p174, %p175
    %p177 = scmp.le.s32.totalorder 1, %s12
    %p178 = scmp.lt.s32.totalorder %s12, 3
    %p179 = pnand %p177, %p178
    %p180 = pneg %p179
    // Predicated region
    $region9: #{conv_block_tanh.2} parent=5 // pred_check
      _
    $region10: #{conv_block_tanh.2} parent=5 // pred_check_branch
      %182 = sbr.rel (%p179) target = $region12
    $region11: #{conv_block_tanh.2} parent=5 // pred_region
      %s183 = ssub.s32 %s12, 1
      // Predicated region
      $region13: #{conv_block_tanh.2} parent=11 // pred_check
        %p184 = pneg %p73
      $region14: #{conv_block_tanh.2} parent=11 // pred_check_branch
        %186 = sbr.rel (%p184) target = $region16
      $region15: #{conv_block_tanh.2} parent=11 // pred_region
        _
      $region16: #{conv_block_tanh.2} parent=11 // pred_fallthru
        _
      // Predicated region
      $region17: #{conv_block_tanh.2} parent=11 // pred_check
        %p187 = pneg %p94
      $region18: #{conv_block_tanh.2} parent=11 // pred_check_branch
        %189 = sbr.rel (%p187) target = $region20
      $region19: #{conv_block_tanh.2} parent=11 // pred_region
        _
      $region20: #{conv_block_tanh.2} parent=11 // pred_fallthru
        _
      // Predicated region
      $region21: #{conv_block_tanh.2} parent=11 // pred_check
        %p190 = pneg %p115
      $region22: #{conv_block_tanh.2} parent=11 // pred_check_branch
        %192 = sbr.rel (%p190) target = $region24
      $region23: #{conv_block_tanh.2} parent=11 // pred_region
        _
      $region24: #{conv_block_tanh.2} parent=11 // pred_fallthru
        _
    $region12: #{conv_block_tanh.2} parent=5 // pred_fallthru
      _
    %p193 = scmp.lt.s32.totalorder %s12, 2
    // Predicated region
    $region25: #{conv_block_tanh.2} parent=5 // pred_check
      %p194 = pneg %p193
    $region26: #{conv_block_tanh.2} parent=5 // pred_check_branch
      %196 = sbr.rel (%p194) target = $region28
    $region27: #{conv_block_tanh.2} parent=5 // pred_region
      // Predicated region
      $region29: #{conv_block_tanh.2} parent=27 // pred_check
        %p197 = pneg %p46
      $region30: #{conv_block_tanh.2} parent=27 // pred_check_branch
        %199 = sbr.rel (%p197) target = $region32
      $region31: #{conv_block_tanh.2} parent=27 // pred_region
        %p200 = scmp.lt.s32.totalorder %s19, 1
        %s201 = scalar_select %p200, %s19, 1
        %p202 = scmp.lt.s32.totalorder %s20, 0
        %s203 = scalar_select %p202, %s20, 0
        %s204 = smul.addr %s203, 3
        %s205 = smul.addr %s201, 3
        %s206 = sadd.s32 %s204, %s205
        %s207 = smul.addr %s206, 4
        %s208 = scalar_lea.vmem %s0, %s207
      $region32: #{conv_block_tanh.2} parent=27 // pred_fallthru
        _
    $region28: #{conv_block_tanh.2} parent=5 // pred_fallthru
      _
    %p209 = scmp.le.s32.totalorder 1, %s12
    %p210 = scmp.lt.s32.totalorder %s12, 3
    %p211 = pnand %p209, %p210
    %p212 = pneg %p211
    // Predicated region
    $region33: #{conv_block_tanh.2} parent=5 // pred_check
      _
    $region34: #{conv_block_tanh.2} parent=5 // pred_check_branch
      %214 = sbr.rel (%p211) target = $region36
    $region35: #{conv_block_tanh.2} parent=5 // pred_region
      %s215 = ssub.s32 %s12, 1
      %p216 = scmp.lt.s32.totalorder %s21, 1
      %s217 = scalar_select %p216, %s21, 1
      %p218 = scmp.lt.s32.totalorder %s22, 0
      %s219 = scalar_select %p218, %s22, 0
      %s220 = smul.addr %s219, 3
      %s221 = smul.addr %s217, 3
      %s222 = sadd.s32 %s220, %s221
      %s223 = smul.addr %s222, 4
      %s224 = scalar_lea.vmem %s0, %s223
      %p225 = pneg %p52
      %p226 = pneg %p49
      %p227 = pneg %p73
      %p228 = pneg %p70
      %p229 = pneg %p94
      %p230 = pneg %p91
      %p231 = pneg %p115
      %p232 = pneg %p112
      %p233 = pneg %p143
      %p234 = pneg %p140
      %s235 = smul.u32 3, %s22
      %p236 = scmp.lt.s32.totalorder %s21, 1
      %s237 = scalar_select %p236, %s21, 1
      %p238 = scmp.lt.s32.totalorder %s235, 2
      %s239 = scalar_select %p238, %s235, 2
      %s240 = smul.addr %s237, 3
      %s241 = sadd.s32 %s239, %s240
      %s242 = smul.addr %s241, 8
      %s243 = scalar_lea.vmem %s4, %s242
      %p244 = pneg %p169
      %p245 = pneg %p166
      %p246 = scmp.lt.s32.totalorder %s21, 1
      %s247 = scalar_select %p246, %s21, 1
      %s248 = smul.addr %s247, 2
      %s249 = scalar_lea.vmem %s5, %s248
      %p250 = scmp.lt.s32.totalorder %s21, 1
      %s251 = scalar_select %p250, %s21, 1
      %p252 = scmp.lt.s32.totalorder %s22, 0
      %s253 = scalar_select %p252, %s22, 0
      %s254 = smul.addr %s253, 3
      %s255 = smul.addr %s251, 3
      %s256 = sadd.s32 %s254, %s255
      %s257 = smul.addr %s256, 4
      %s258 = scalar_lea.vmem %s0, %s257
      %s259 = smul.u32 3, %s22
      %p260 = scmp.lt.s32.totalorder %s21, 1
      %s261 = scalar_select %p260, %s21, 1
      %p262 = scmp.lt.s32.totalorder %s259, 2
      %s263 = scalar_select %p262, %s259, 2
      %s264 = smul.addr %s261, 3
      %s265 = sadd.s32 %s263, %s264
      %s266 = smul.addr %s265, 8
      %s267 = scalar_lea.vmem %s4, %s266
      %s268 = smul.u32 3, %s22
      %p269 = scmp.lt.s32.totalorder %s21, 1
      %s270 = scalar_select %p269, %s21, 1
      %s271 = smul.addr %s270, 2
      %s272 = scalar_lea.vmem %s5, %s271
      %v273 = vld [vmem:[%s258] sm:$0xff]
      %v274 = vld [vmem:[%s258 + $0x8] sm:$0xf]
      %v277 = vcombine.high %v273, %v273
      %v279 = vcombine.low %v273, %v273
      %v280 = vcombine.low %v274, %v274
      %281 = vrot.lane.b32.xlu0 %v279, 127
      %v282 = vpop.permute.xlu0 %281
      %283 = vrot.lane.b32.xlu0 %v273, 127
      %v284 = vpop.permute.xlu0 %283
      %285 = vrot.lane.b32.xlu0 %v280, 127
      %v286 = vpop.permute.xlu0 %285
      %vm287 = vcmask 1039360
      %v288 = vsel %vm287, %v282, %v284
      %v289 = vsel %vm287, %v284, %v286
      %293 = vrot.lane.b32.xlu0 %v273, 126
      %v294 = vpop.permute.xlu0 %293
      %295 = vrot.lane.b32.xlu0 %v277, 126
      %v296 = vpop.permute.xlu0 %295
      %297 = vrot.lane.b32.xlu0 %v274, 126
      %v298 = vpop.permute.xlu0 %297
      %vm299 = vcmask 1031168
      %v300 = vsel %vm299, %v294, %v296
      %v301 = vsel %vm299, %v296, %v298
      %305 = vrot.lane.b32.xlu0 %v279, 110
      %v306 = vpop.permute.xlu0 %305
      %307 = vrot.lane.b32.xlu0 %v273, 110
      %v308 = vpop.permute.xlu0 %307
      %309 = vrot.lane.b32.xlu0 %v280, 110
      %v310 = vpop.permute.xlu0 %309
      %vm311 = vcmask 900096
      %v312 = vsel %vm311, %v306, %v308
      %v313 = vsel %vm311, %v308, %v310
      %317 = vrot.lane.b32.xlu0 %v273, 109
      %v318 = vpop.permute.xlu0 %317
      %319 = vrot.lane.b32.xlu0 %v277, 109
      %v320 = vpop.permute.xlu0 %319
      %321 = vrot.lane.b32.xlu0 %v274, 109
      %v322 = vpop.permute.xlu0 %321
      %vm323 = vcmask 891904
      %v324 = vsel %vm323, %v318, %v320
      %v325 = vsel %vm323, %v320, %v322
      %329 = vrot.lane.b32.xlu0 %v279, 108
      %v330 = vpop.permute.xlu0 %329
      %331 = vrot.lane.b32.xlu0 %v273, 108
      %v332 = vpop.permute.xlu0 %331
      %333 = vrot.lane.b32.xlu0 %v280, 108
      %v334 = vpop.permute.xlu0 %333
      %vm335 = vcmask 883712
      %v336 = vsel %vm335, %v330, %v332
      %v337 = vsel %vm335, %v332, %v334
      %341 = vrot.lane.b32.xlu0 %v273, 92
      %v342 = vpop.permute.xlu0 %341
      %343 = vrot.lane.b32.xlu0 %v277, 92
      %v344 = vpop.permute.xlu0 %343
      %345 = vrot.lane.b32.xlu0 %v274, 92
      %v346 = vpop.permute.xlu0 %345
      %vm347 = vcmask 752640
      %v348 = vsel %vm347, %v342, %v344
      %v349 = vsel %vm347, %v344, %v346
      %353 = vrot.lane.b32.xlu0 %v279, 91
      %v354 = vpop.permute.xlu0 %353
      %355 = vrot.lane.b32.xlu0 %v273, 91
      %v356 = vpop.permute.xlu0 %355
      %357 = vrot.lane.b32.xlu0 %v280, 91
      %v358 = vpop.permute.xlu0 %357
      %vm359 = vcmask 744448
      %v360 = vsel %vm359, %v354, %v356
      %v361 = vsel %vm359, %v356, %v358
      %365 = vrot.lane.b32.xlu0 %v273, 90
      %v366 = vpop.permute.xlu0 %365
      %367 = vrot.lane.b32.xlu0 %v277, 90
      %v368 = vpop.permute.xlu0 %367
      %369 = vrot.lane.b32.xlu0 %v274, 90
      %v370 = vpop.permute.xlu0 %369
      %vm371 = vcmask 736256
      %v372 = vsel %vm371, %v366, %v368
      %v373 = vsel %vm371, %v368, %v370
      %vm374 = vcmask 1043456
      %v375 = vsel %vm374, %v273, %v288
      %v376 = vsel %vm374, %v277, %v289
      %v377 = vsel %vm374, %v274, %v286
      %v378 = vsel %vm374, %v300, %v312
      %v379 = vsel %vm374, %v301, %v313
      %v380 = vsel %vm374, %v298, %v310
      %v381 = vsel %vm374, %v324, %v336
      %v382 = vsel %vm374, %v325, %v337
      %v383 = vsel %vm374, %v322, %v334
      %v384 = vsel %vm374, %v348, %v360
      %v385 = vsel %vm374, %v349, %v361
      %v386 = vsel %vm374, %v346, %v358
      %v387 = vld [vmem:[%s1] sm:$0xff]
      %v388 = vld [vmem:[%s2] sm:$0xff]
      %390 = vset.pattern.permute.xlu0 0
      %391 = vperm.xlu0 %390, %v388
      %v392 = vpop.permute.xlu0 %391
      %vm394 = vcmask 293888
      %v396 = vsel %vm394, %v387, 0
      %v398 = vsel %vm374, %v372, 0
      %v400 = vsel %vm374, %v373, 0
      %v402 = vsel %vm374, %v370, 0
      %404 = vmatprep.subr.mxu0 %v376
      %405 = vmatpush1.msra.mxu0 %v375
      %406 = vmatprep.subr.mxu0 %v379
      %407 = vmatpush1.msra.mxu0 %v378
      %408 = vmatprep.subr.mxu0 %v382
      %409 = vmatpush1.msra.mxu0 %v381
      %410 = vmatprep.subr.mxu0 %v385
      %411 = vmatpush1.msra.mxu0 %v384
      %412 = vmatprep.subr.mxu0 %v400
      %413 = vmatpush1.msra.mxu0 %v398
      %414 = vmatprep.subr.mxu0 0.0
      %415 = vmatpush1.msra.mxu0 0.0
      %416 = vmatprep.subr.mxu0 0.0
      %417 = vmatpush1.msra.mxu0 0.0
      %418 = vmatprep.subr.mxu0 0.0
      %419 = vmatpush1.msra.mxu0 0.0
      %420 = vmatprep.subr.mxu0 0.0
      %421 = vmatpush1.msra.mxu0 0.0
      %422 = vmatprep.subr.mxu0 0.0
      %423 = vmatpush1.msra.mxu0 0.0
      %424 = vmatprep.subr.mxu0 0.0
      %425 = vmatpush1.msra.mxu0 0.0
      %426 = vmatprep.subr.mxu0 0.0
      %427 = vmatpush1.msra.mxu0 0.0
      %428 = vmatprep.subr.mxu0 0.0
      %429 = vmatpush1.msra.mxu0 0.0
      %430 = vmatprep.subr.mxu0 0.0
      %431 = vmatpush1.msra.mxu0 0.0
      %432 = vmatprep.subr.mxu0 0.0
      %433 = vmatpush1.msra.mxu0 0.0
      %434 = vmatprep.subr.mxu0 0.0
      %435 = vmatpush1.msra.mxu0 0.0
      %436 = vmatprep.subr.mxu0 0.0
      %437 = vmatpush1.msra.mxu0 0.0
      %438 = vmatprep.subr.mxu0 0.0
      %439 = vmatpush1.msra.mxu0 0.0
      %440 = vmatprep.subr.mxu0 0.0
      %441 = vmatpush1.msra.mxu0 0.0
      %442 = vmatprep.subr.mxu0 0.0
      %443 = vmatpush1.msra.mxu0 0.0
      %444 = vmatprep.subr.mxu0 0.0
      %445 = vmatpush1.msra.mxu0 0.0
      %446 = vmatprep.subr.mxu0 0.0
      %447 = vmatpush1.msra.mxu0 0.0
      %448 = vmatprep.subr.mxu0 0.0
      %449 = vmatpush1.msra.mxu0 0.0
      %450 = vmatprep.subr.mxu0 0.0
      %451 = vmatpush1.msra.mxu0 0.0
      %452 = vmatprep.subr.mxu0 0.0
      %453 = vmatpush1.msra.mxu0 0.0
      %454 = vmatprep.subr.mxu0 0.0
      %455 = vmatpush1.msra.mxu0 0.0
      %456 = vmatprep.subr.mxu0 0.0
      %457 = vmatpush1.msra.mxu0 0.0
      %458 = vmatprep.subr.mxu0 0.0
      %459 = vmatpush1.msra.mxu0 0.0
      %460 = vmatprep.subr.mxu0 0.0
      %461 = vmatpush1.msra.mxu0 0.0
      %462 = vmatprep.subr.mxu0 0.0
      %463 = vmatpush1.msra.mxu0 0.0
      %464 = vmatprep.subr.mxu0 0.0
      %465 = vmatpush1.msra.mxu0 0.0
      %466 = vmatprep.subr.mxu0 0.0
      %467 = vmatpush1.msra.mxu0 0.0
      %468 = vmatprep.mubr.f32.mxu0 0.0
      %469 = vmatmul.mubr.f32.gmra.mrb[0].mxu0 %v396
      %v470 = vpop.f32.mrb[0].mxu0
      %v471 = vadd.f32 %v392, %v470
      %v472 = vpop.f32.mrb[0].mxu0
      %v473 = vadd.f32 %v392, %v472
      %474 = vdwg.mxu0
      %475 = vmatprep.subr.mxu0 0.0
      %476 = vmatpush1.msra.mxu0 %v377
      %477 = vmatprep.subr.mxu0 0.0
      %478 = vmatpush1.msra.mxu0 %v380
      %479 = vmatprep.subr.mxu0 0.0
      %480 = vmatpush1.msra.mxu0 %v383
      %481 = vmatprep.subr.mxu0 0.0
      %482 = vmatpush1.msra.mxu0 %v386
      %483 = vmatprep.subr.mxu0 0.0
      %484 = vmatpush1.msra.mxu0 %v402
      %485 = vmatprep.subr.mxu0 0.0
      %486 = vmatpush1.msra.mxu0 0.0
      %487 = vmatprep.subr.mxu0 0.0
      %488 = vmatpush1.msra.mxu0 0.0
      %489 = vmatprep.subr.mxu0 0.0
      %490 = vmatpush1.msra.mxu0 0.0
      %491 = vmatprep.subr.mxu0 0.0
      %492 = vmatpush1.msra.mxu0 0.0
      %493 = vmatprep.subr.mxu0 0.0
      %494 = vmatpush1.msra.mxu0 0.0
      %495 = vmatprep.subr.mxu0 0.0
      %496 = vmatpush1.msra.mxu0 0.0
      %497 = vmatprep.subr.mxu0 0.0
      %498 = vmatpush1.msra.mxu0 0.0
      %499 = vmatprep.subr.mxu0 0.0
      %500 = vmatpush1.msra.mxu0 0.0
      %501 = vmatprep.subr.mxu0 0.0
      %502 = vmatpush1.msra.mxu0 0.0
      %503 = vmatprep.subr.mxu0 0.0
      %504 = vmatpush1.msra.mxu0 0.0
      %505 = vmatprep.subr.mxu0 0.0
      %506 = vmatpush1.msra.mxu0 0.0
      %507 = vmatprep.subr.mxu0 0.0
      %508 = vmatpush1.msra.mxu0 0.0
      %509 = vmatprep.subr.mxu0 0.0
      %510 = vmatpush1.msra.mxu0 0.0
      %511 = vmatprep.subr.mxu0 0.0
      %512 = vmatpush1.msra.mxu0 0.0
      %513 = vmatprep.subr.mxu0 0.0
      %514 = vmatpush1.msra.mxu0 0.0
      %515 = vmatprep.subr.mxu0 0.0
      %516 = vmatpush1.msra.mxu0 0.0
      %517 = vmatprep.subr.mxu0 0.0
      %518 = vmatpush1.msra.mxu0 0.0
      %519 = vmatprep.subr.mxu0 0.0
      %520 = vmatpush1.msra.mxu0 0.0
      %521 = vmatprep.subr.mxu0 0.0
      %522 = vmatpush1.msra.mxu0 0.0
      %523 = vmatprep.subr.mxu0 0.0
      %524 = vmatpush1.msra.mxu0 0.0
      %525 = vmatprep.subr.mxu0 0.0
      %526 = vmatpush1.msra.mxu0 0.0
      %527 = vmatprep.subr.mxu0 0.0
      %528 = vmatpush1.msra.mxu0 0.0
      %529 = vmatprep.subr.mxu0 0.0
      %530 = vmatpush1.msra.mxu0 0.0
      %531 = vmatprep.subr.mxu0 0.0
      %532 = vmatpush1.msra.mxu0 0.0
      %533 = vmatprep.subr.mxu0 0.0
      %534 = vmatpush1.msra.mxu0 0.0
      %535 = vmatprep.subr.mxu0 0.0
      %536 = vmatpush1.msra.mxu0 0.0
      %537 = vmatprep.subr.mxu0 0.0
      %538 = vmatpush1.msra.mxu0 0.0
      %539 = vmatprep.mubr.f32.mxu0 0.0
      %540 = vmatmul.mubr.f32.gmra.mrb[0].mxu0 %v396
      %v541 = vpop.f32.mrb[0].mxu0
      %v542 = vadd.f32 %v392, %v541
      %v543 = vpop.f32.mrb[0].mxu0
      %544 = vdwg.mxu0
      %v545 = vld [vmem:[%s3] sm:$0x7]
      %v547 = vlaneseq
      %v548 = vshrl.u32 %v547, 7
      %v549 = vsub.s32 0, %v548
      %v550 = vrot.slane %v545, %v549
      %v551 = vlaneseq
      %v552 = vshrl.u32 %v551, 7
      %v553 = vsub.s32 1, %v552
      %v554 = vrot.slane %v545, %v553
      %v555 = vlaneseq
      %v556 = vshrl.u32 %v555, 7
      %v557 = vsub.s32 2, %v556
      %v558 = vrot.slane %v545, %v557
      %v562 = vmul.f32 %v471, %v550
      %v563 = vmul.f32 %v473, %v554
      %v564 = vmul.f32 %v542, %v558
      %v565 = vadd.f32 %v562, %v563
      %vm566 = vcmask 261120
      %v567 = vsel %vm566, %v564, 0.0
      %v568 = vadd.f32 %v565, %v567
      %569 = vadd.xlane.f32.xlu0 %v568
      %v570 = vpop.xlane.xlu0 %569
      %v571 = vmul.f32 %v570, 0.00390625
      %v572 = vsub.f32 %v471, %v571
      %v573 = vsub.f32 %v473, %v571
      %v574 = vsub.f32 %v542, %v571
      %v575 = vmul.f32 %v572, %v550
      %v576 = vmul.f32 %v573, %v554
      %v577 = vmul.f32 %v574, %v558
      %v578 = vmul.f32 %v575, %v575
      %v579 = vmul.f32 %v576, %v576
      %v580 = vmul.f32 %v577, %v577
      %v581 = vadd.f32 %v578, %v579
      %v582 = vsel %vm566, %v580, 0.0
      %v583 = vadd.f32 %v581, %v582
      %584 = vadd.xlane.f32.xlu0 %v583
      %v585 = vpop.xlane.xlu0 %584
      %p586 = scmp.eq.s32.totalorder %s22, 0
      // Predicated region
      $region37: #{conv_block_tanh.2} parent=35 // pred_check
        %p587 = pneg %p586
      $region38: #{conv_block_tanh.2} parent=35 // pred_check_branch
        %589 = sbr.rel (%p587) target = $region40
      $region39: #{conv_block_tanh.2} parent=35 // pred_region
        %v591 = vlaneseq
        %v592 = vand.u32 %v591, 127
        %v593 = vlaneseq
        %v594 = vshrl.u32 %v593, 7
        %v595 = vsub.s32 %v592, %v594
        %v596 = vrot.slane %v570, %v595
        %vm598 = vcmask 57344
        %599 = vst.msk [vmem:[%s272] sm:$0x1] %vm598, %v596
        %v601 = vlaneseq
        %v602 = vshrl.u32 %v601, 7
        %v603 = vsub.s32 %v592, %v602
        %v604 = vrot.slane %v585, %v603
        %606 = vst.msk [vmem:[%s272 + $0x1] sm:$0x1] %vm598, %v604
      $region40: #{conv_block_tanh.2} parent=35 // pred_fallthru
        _
      %p607 = scmp.gt.s32.totalorder %s22, 0
      // Predicated region
      $region41: #{conv_block_tanh.2} parent=35 // pred_check
        %p608 = pneg %p607
      $region42: #{conv_block_tanh.2} parent=35 // pred_check_branch
        %610 = sbr.rel (%p608) target = $region44
      $region43: #{conv_block_tanh.2} parent=35 // pred_region
        %s611 = scvt.s32.f32 %s22
        %s612 = smul.f32 %s611, 256.0
        %v613 = vld [vmem:[%s272] sm:$0x1]
        %v614 = vld [vmem:[%s272 + $0x1] sm:$0x1]
        %v615 = vstv %s612
        %v616 = vrcp.pop %v615
        %v617 = vmul.f32 %v613, %v616
        %v619 = vlaneseq
        %v620 = vshrl.u32 %v619, 7
        %v621 = vsub.s32 0, %v620
        %v622 = vrot.slane %v617, %v621
        %624 = vbcast.lane.b32.xlu0 %v622, 256
        %v625 = vpop.permute.xlu0 %624
        %v627 = vsub.f32 %v571, %v625
        %v629 = vlaneseq
        %v630 = vand.u32 %v629, 127
        %v631 = vlaneseq
        %v632 = vshrl.u32 %v631, 7
        %v633 = vsub.s32 %v630, %v632
        %v634 = vrot.slane %v570, %v633
        %v636 = vadd.f32 %v613, %v634
        %vm637 = vcmask 57344
        %638 = vst.msk [vmem:[%s272] sm:$0x1] %vm637, %v636
        %v640 = vlaneseq
        %v641 = vshrl.u32 %v640, 7
        %v642 = vsub.s32 %v630, %v641
        %v643 = vrot.slane %v585, %v642
        %v645 = vadd.f32 %v614, %v643
        %v646 = vmul.f32 %v627, %v627
        %s647 = smul.f32 %s612, 256.0
        %s648 = sadd.f32 %s612, 256.0
        %v649 = vstv %s648
        %v650 = vrcp.pop %v649
        %s651 = vtos %v650
        %s652 = smul.f32 %s647, %s651
        %v653 = vstv %s652
        %v654 = vmul.f32 %v646, %v653
        %656 = vset.pattern.permute.xlu0 0
        %657 = vperm.xlu0 %656, %v654
        %v658 = vpop.permute.xlu0 %657
        %v659 = vlaneseq
        %v660 = vshrl.u32 %v659, 7
        %v661 = vsub.s32 %v630, %v660
        %v662 = vrot.slane %v658, %v661
        %v664 = vadd.f32 %v645, %v662
        %665 = vst.msk [vmem:[%s272 + $0x1] sm:$0x1] %vm637, %v664
      $region44: #{conv_block_tanh.2} parent=35 // pred_fallthru
        _
      %666 = vst [vmem:[%s267] sm:$0xff] %v471
      %667 = vst [vmem:[%s267 + $0x8] sm:$0xff] %v473
      %668 = vst.msk [vmem:[%s267 + $0x10] sm:$0xff] %vm566, %v542
      %s669 = smul.u32 3, %s22
      %p670 = scmp.lt.s32.totalorder %s21, 1
      %s671 = scalar_select %p670, %s21, 1
      %p672 = scmp.lt.s32.totalorder %s669, 2
      %s673 = scalar_select %p672, %s669, 2
      %s674 = smul.addr %s671, 3
      %s675 = sadd.s32 %s673, %s674
      %s676 = smul.addr %s675, 8
      %s677 = scalar_lea.vmem %s4, %s676
      %p678 = scmp.lt.s32.totalorder %s21, 1
      %s679 = scalar_select %p678, %s21, 1
      %s680 = smul.addr %s679, 2
      %s681 = scalar_lea.vmem %s5, %s680
      // Predicated region
      $region45: #{conv_block_tanh.2} parent=35 // pred_check
        %p682 = pneg %p140
      $region46: #{conv_block_tanh.2} parent=35 // pred_check_branch
        %684 = sbr.rel (%p682) target = $region48
      $region47: #{conv_block_tanh.2} parent=35 // pred_region
        %s685 = smul.u32 3, %s22
      $region48: #{conv_block_tanh.2} parent=35 // pred_fallthru
        _
      // Predicated region
      $region49: #{conv_block_tanh.2} parent=35 // pred_check
        %p686 = pneg %p166
      $region50: #{conv_block_tanh.2} parent=35 // pred_check_branch
        %688 = sbr.rel (%p686) target = $region52
      $region51: #{conv_block_tanh.2} parent=35 // pred_region
        _
      $region52: #{conv_block_tanh.2} parent=35 // pred_fallthru
        _
    $region36: #{conv_block_tanh.2} parent=5 // pred_fallthru
      _
    %p689 = scmp.le.s32.totalorder 2, %s12
    // Predicated region
    $region53: #{conv_block_tanh.2} parent=5 // pred_check
      %p690 = pneg %p689
    $region54: #{conv_block_tanh.2} parent=5 // pred_check_branch
      %692 = sbr.rel (%p690) target = $region56
    $region55: #{conv_block_tanh.2} parent=5 // pred_region
      %s693 = ssub.s32 %s12, 2
      // Predicated region
      $region57: #{conv_block_tanh.2} parent=55 // pred_check
        %p694 = pneg %p146
      $region58: #{conv_block_tanh.2} parent=55 // pred_check_branch
        %696 = sbr.rel (%p694) target = $region60
      $region59: #{conv_block_tanh.2} parent=55 // pred_region
        %s697 = smul.u32 3, %s24
        %p698 = scmp.lt.s32.totalorder %s23, 1
        %s699 = scalar_select %p698, %s23, 1
        %p700 = scmp.lt.s32.totalorder %s697, 2
        %s701 = scalar_select %p700, %s697, 2
        %s702 = smul.addr %s699, 3
        %s703 = sadd.s32 %s701, %s702
        %s704 = smul.addr %s703, 8
        %s705 = scalar_lea.vmem %s4, %s704
      $region60: #{conv_block_tanh.2} parent=55 // pred_fallthru
        _
      // Predicated region
      $region61: #{conv_block_tanh.2} parent=55 // pred_check
        %p706 = pneg %p172
      $region62: #{conv_block_tanh.2} parent=55 // pred_check_branch
        %708 = sbr.rel (%p706) target = $region64
      $region63: #{conv_block_tanh.2} parent=55 // pred_region
        %p709 = scmp.lt.s32.totalorder %s23, 1
        %s710 = scalar_select %p709, %s23, 1
        %s711 = smul.addr %s710, 2
        %s712 = scalar_lea.vmem %s5, %s711
      $region64: #{conv_block_tanh.2} parent=55 // pred_fallthru
        _
    $region56: #{conv_block_tanh.2} parent=5 // pred_fallthru
      _
  $region6: #{conv_block_tanh.2} parent=0 // loop_footer
    %s16 = sadd.s32 1, %s12
  $region7: #{conv_block_tanh.2} parent=0 // loop_footer_branch
    %11 = sbr.rel target = $region3
  $region8: #{conv_block_tanh.2} parent=0 // loop_exit
    _

</llo_original>
